<compile_context>
chip_gen: v5e
topology: v5e:2x2
jax: 0.10.0
libtpu: 0.0.40
codegen_flags: <defaults>
</compile_context>

<pallas_src>
import functools

import jax
import jax.numpy as jnp
from jax.experimental import pallas as pl
from jax.experimental.pallas import tpu as pltpu

LN_EPS = 1e-5      # PyTorch nn.LayerNorm default
D_OUT_PAD = 128    # lane-dense padded head width


def _round_up(n, m):
    return ((n + m - 1) // m) * m


def _fused_layernorm(x, w, b, inv_d):
    # One pass: sum and sum-of-squares together; rsqrt goes to the EUP.
    s = jnp.sum(x, axis=-1, keepdims=True)
    ss = jnp.sum(x * x, axis=-1, keepdims=True)
    mu = s * inv_d
    var = ss * inv_d - mu * mu
    inv = jax.lax.rsqrt(var + LN_EPS)
    return (x - mu) * inv * w + b


# ---------------- the kernel ----------------
def resnet_kernel(n_layers, inv_d,
                  x_ref, wf_ref, bf_ref,
                  lnw_ref, lnb_ref, w0_ref, b0_ref, w1_ref, b1_ref,
                  lnlw_ref, lnlb_ref, wh_ref, bh_ref,
                  o_ref):
    # first_layer: (TILE_B, d_in)bf16 @ (d_in, d)bf16 -> f32 accumulate
    x = jnp.dot(x_ref[...], wf_ref[...],
                preferred_element_type=jnp.float32) + bf_ref[...]

    # residual blocks (statically unrolled; n_layers is a Python int so the
    # per-layer weight slices below are static -> zero-cost ref views)
    for l in range(n_layers):
        z = _fused_layernorm(x, lnw_ref[l:l + 1, :], lnb_ref[l:l + 1, :], inv_d)
        z = jnp.dot(z.astype(jnp.bfloat16), w0_ref[l],
                    preferred_element_type=jnp.float32) + b0_ref[l:l + 1, :]
        z = jnp.maximum(z, 0.0)                # main_activation = relu
        # hidden_dropout = 0.0 -> identity (eval mode)
        z = jnp.dot(z.astype(jnp.bfloat16), w1_ref[l],
                    preferred_element_type=jnp.float32) + b1_ref[l:l + 1, :]
        # residual_dropout = 0.0 -> identity (eval mode)
        x = x + z

    x = _fused_layernorm(x, lnlw_ref[...], lnlb_ref[...], inv_d)
    x = jnp.maximum(x, 0.0)                    # last_activation = relu
    # lane-dense (TILE_B, 128) store; padded head columns are zero.
    o_ref[...] = jnp.dot(x.astype(jnp.bfloat16), wh_ref[...],
                         preferred_element_type=jnp.float32) + bh_ref[...]


# ---------------- wrapper ----------------
def pack_params_for_kernel(params, d_out_pad=D_OUT_PAD):
    """bf16 matmul weights + lane-dense padded head; biases / LN params stay f32."""
    d, d_out = params["w_head"].shape
    w_head_p = jnp.zeros((d, d_out_pad), jnp.float32).at[:, :d_out].set(
        params["w_head"])
    b_head_p = jnp.zeros((1, d_out_pad), jnp.float32).at[:, :d_out].set(
        params["b_head"])
    return {
        "w_first": params["w_first"].astype(jnp.bfloat16),
        "b_first": params["b_first"],
        "ln_w": params["ln_w"],
        "ln_b": params["ln_b"],
        "w0": params["w0"].astype(jnp.bfloat16),
        "b0": params["b0"],
        "w1": params["w1"].astype(jnp.bfloat16),
        "b1": params["b1"],
        "ln_last_w": params["ln_last_w"],
        "ln_last_b": params["ln_last_b"],
        "w_head": w_head_p.astype(jnp.bfloat16),
        "b_head": b_head_p,
    }


def resnet_forward_pallas(x, kp, n_layers, d_out, *, tile_b=512):
    B, d_in = x.shape
    d = kp["w_first"].shape[1]
    d_hidden = kp["w0"].shape[2]
    d_out_pad = kp["w_head"].shape[1]

    # Batch tile: multiple of 16 (bf16 sublane packing), capped at `tile_b`.
    tile_b = max(16, min(tile_b, _round_up(B, 16)))
    b_pad = _round_up(B, tile_b)
    if b_pad != B:
        x = jnp.pad(x, ((0, b_pad - B), (0, 0)))
    x = x.astype(jnp.bfloat16)
    grid = (b_pad // tile_b,)

    def resident(arr):
        # full-array block + constant index_map -> stays in VMEM across steps
        nd = arr.ndim
        return pl.BlockSpec(arr.shape, lambda i, _nd=nd: (0,) * _nd)

    param_order = ("w_first", "b_first", "ln_w", "ln_b", "w0", "b0", "w1",
                   "b1", "ln_last_w", "ln_last_b", "w_head", "b_head")
    param_args = tuple(kp[k] for k in param_order)

    in_specs = [pl.BlockSpec((tile_b, d_in), lambda i: (i, 0))]
    in_specs += [resident(a) for a in param_args]
    out_specs = pl.BlockSpec((tile_b, d_out_pad), lambda i: (i, 0))

    flops = 2 * b_pad * (d_in * d
                         + n_layers * (d * d_hidden + d_hidden * d)
                         + d * d_out_pad)
    transcendentals = b_pad * (n_layers + 1)          # one rsqrt per row per LN
    bytes_accessed = (x.size * x.dtype.itemsize
                      + b_pad * d_out_pad * 4
                      + sum(int(a.size) * a.dtype.itemsize for a in param_args))

    out = pl.pallas_call(
        functools.partial(resnet_kernel, n_layers, 1.0 / d),
        out_shape=jax.ShapeDtypeStruct((b_pad, d_out_pad), jnp.float32),
        grid=grid,
        in_specs=in_specs,
        out_specs=out_specs,
        compiler_params=pltpu.CompilerParams(
            dimension_semantics=("parallel",),       # v7x: shard over both TCs
            vmem_limit_bytes=32 * 1024 * 1024),
        cost_estimate=pl.CostEstimate(
            flops=int(flops),
            transcendentals=int(transcendentals),
            bytes_accessed=int(bytes_accessed)),
    )(x, *param_args)
    return out[:B, :d_out]


# ---------------- glue: categorical embedding (plain JAX) ----------------
def embed_categorical(x_cat, emb_weight, category_offsets):
    idx = x_cat + category_offsets[None, :]        # (B, n_cat)
    emb = emb_weight[idx]                          # (B, n_cat, d_emb)
    return emb.reshape(x_cat.shape[0], -1)         # (B, n_cat * d_emb)


# ---------------- deterministic parameter init ----------------
def init_params(key, *, d_in, d, d_hidden, n_layers, d_out,
                n_cat_total, d_embedding):
    ks = jax.random.split(key, 10)

    def unif(k, shape, fan_in):
        bound = 1.0 / jnp.sqrt(jnp.float32(max(fan_in, 1)))
        return jax.random.uniform(k, shape, jnp.float32, -bound, bound)

    params = {
        "emb_weight": jax.random.uniform(ks[0], (n_cat_total, d_embedding),
                                         jnp.float32, -0.5, 0.5),
        "w_first": unif(ks[1], (d_in, d), d_in),
        "b_first": unif(ks[2], (1, d), d_in),
        "ln_w": jnp.ones((n_layers, d), jnp.float32),
        "ln_b": jnp.zeros((n_layers, d), jnp.float32),
        "w0": unif(ks[3], (n_layers, d, d_hidden), d),
        "b0": unif(ks[4], (n_layers, d_hidden), d),
        "w1": unif(ks[5], (n_layers, d_hidden, d), d_hidden),
        "b1": unif(ks[6], (n_layers, d), d_hidden),
        "ln_last_w": jnp.ones((1, d), jnp.float32),
        "ln_last_b": jnp.zeros((1, d), jnp.float32),
        "w_head": unif(ks[7], (d, d_out), d),
        "b_head": unif(ks[8], (1, d_out), d),
    }
    return params


# ---------------- plain-JAX references for validation ----------------
def resnet_forward_ref_bf16(x, kp, n_layers, d_out):
    """Same computation as the kernel (bf16 matmul inputs, f32 accumulate)."""
    d = kp["w_first"].shape[1]
    inv_d = 1.0 / d
    h = jnp.dot(x.astype(jnp.bfloat16), kp["w_first"],
                preferred_element_type=jnp.float32) + kp["b_first"]
    for l in range(n_layers):
        z = _fused_layernorm(h, kp["ln_w"][l:l + 1], kp["ln_b"][l:l + 1], inv_d)
        z = jnp.dot(z.astype(jnp.bfloat16), kp["w0"][l],
                    preferred_element_type=jnp.float32) + kp["b0"][l:l + 1]
        z = jnp.maximum(z, 0.0)
        z = jnp.dot(z.astype(jnp.bfloat16), kp["w1"][l],
                    preferred_element_type=jnp.float32) + kp["b1"][l:l + 1]
        h = h + z
    h = _fused_layernorm(h, kp["ln_last_w"], kp["ln_last_b"], inv_d)
    h = jnp.maximum(h, 0.0)
    o = jnp.dot(h.astype(jnp.bfloat16), kp["w_head"],
                preferred_element_type=jnp.float32) + kp["b_head"]
    return o[:, :d_out]


def resnet_forward_ref_f32(x, params, n_layers):
    """Pure-f32 semantics of the original PyTorch module (eval mode)."""
    def ln(h, w, b):
        mu = jnp.mean(h, axis=-1, keepdims=True)
        hc = h - mu
        var = jnp.mean(hc * hc, axis=-1, keepdims=True)
        return hc * jax.lax.rsqrt(var + LN_EPS) * w + b

    h = x @ params["w_first"] + params["b_first"]
    for l in range(n_layers):
        z = ln(h, params["ln_w"][l:l + 1], params["ln_b"][l:l + 1])
        z = z @ params["w0"][l] + params["b0"][l:l + 1]
        z = jnp.maximum(z, 0.0)
        z = z @ params["w1"][l] + params["b1"][l:l + 1]
        h = h + z
    h = ln(h, params["ln_last_w"], params["ln_last_b"])
    h = jnp.maximum(h, 0.0)
    return h @ params["w_head"] + params["b_head"]


if __name__ == "__main__":
    # Model config
    d_numerical = 4
    categories = [3, 5]
    d_embedding = 8
    d = 32
    d_hidden_factor = 2.0
    n_layers = 2
    d_out = 4
    B = 200          # deliberately not a multiple of the tile: exercises padding

    d_hidden = int(d * d_hidden_factor)
    d_in = d_numerical + len(categories) * d_embedding
    n_cat_total = sum(categories)
    category_offsets = jnp.array([0] + categories[:-1], jnp.int32).cumsum(0)

    key = jax.random.PRNGKey(0)
    k_param, k_num, k_cat = jax.random.split(key, 3)

    params = init_params(k_param, d_in=d_in, d=d, d_hidden=d_hidden,
                         n_layers=n_layers, d_out=d_out,
                         n_cat_total=n_cat_total, d_embedding=d_embedding)

    x_num = jax.random.normal(k_num, (B, d_numerical), jnp.float32)
    cat_keys = jax.random.split(k_cat, len(categories))
    x_cat = jnp.stack(
        [jax.random.randint(cat_keys[i], (B,), 0, c, jnp.int32)
         for i, c in enumerate(categories)], axis=-1)

    # glue: embedding lookup + concat (outside kernel)
    # TODO(synk): the nn.Embedding gather stays in plain JAX; an in-kernel DMA
    # gather is not worth it for 8 tiny embedding rows.
    x_emb = embed_categorical(x_cat, params["emb_weight"], category_offsets)
    x = jnp.concatenate([x_num, x_emb], axis=-1)   # (B, d_in)

    kp = pack_params_for_kernel(params)

    # tile_b=128 -> grid of 2 steps over the padded batch of 256
    out = resnet_forward_pallas(x, kp, n_layers, d_out, tile_b=128)
    out = jax.block_until_ready(out)

    ref_bf16 = resnet_forward_ref_bf16(x, kp, n_layers, d_out)
    ref_f32 = resnet_forward_ref_f32(x, params, n_layers)

    assert out.shape == (B, d_out)
    assert jnp.allclose(out, ref_bf16, atol=5e-3, rtol=5e-3)
    assert jnp.allclose(out, ref_f32, atol=1e-1, rtol=1e-1)

    print("KERNEL_OK")
</pallas_src>

<mosaic_0001>
module attributes {stable_mosaic.version = 11 : i64} {
  func.func @resnet_kernel(%arg0: i32, %arg1: memref<128x20xbf16, #tpu.memory_space<vmem>>, %arg2: memref<20x32xbf16, #tpu.memory_space<vmem>>, %arg3: memref<1x32xf32, #tpu.memory_space<vmem>>, %arg4: memref<2x32xf32, #tpu.memory_space<vmem>>, %arg5: memref<2x32xf32, #tpu.memory_space<vmem>>, %arg6: memref<2x32x64xbf16, #tpu.memory_space<vmem>>, %arg7: memref<2x64xf32, #tpu.memory_space<vmem>>, %arg8: memref<2x64x32xbf16, #tpu.memory_space<vmem>>, %arg9: memref<2x32xf32, #tpu.memory_space<vmem>>, %arg10: memref<1x32xf32, #tpu.memory_space<vmem>>, %arg11: memref<1x32xf32, #tpu.memory_space<vmem>>, %arg12: memref<32x128xbf16, #tpu.memory_space<vmem>>, %arg13: memref<1x128xf32, #tpu.memory_space<vmem>>, %arg14: memref<128x128xf32, #tpu.memory_space<vmem>>) attributes {dimension_semantics = [#tpu.dimension_semantics<parallel>], iteration_bounds = array<i64: 2>, scalar_prefetch = 0 : i64, scratch_operands = 0 : i64, tpu.core_type = #tpu.core_type<tc>, window_params = [{transform_indices = @transform_0, window_bounds = array<i64: 128, 20>}, {pipeline_mode = #tpu.pipeline_mode<synchronous>, transform_indices = @transform_1, window_bounds = array<i64: 20, 32>}, {pipeline_mode = #tpu.pipeline_mode<synchronous>, transform_indices = @transform_2, window_bounds = array<i64: 1, 32>}, {pipeline_mode = #tpu.pipeline_mode<synchronous>, transform_indices = @transform_3, window_bounds = array<i64: 2, 32>}, {pipeline_mode = #tpu.pipeline_mode<synchronous>, transform_indices = @transform_4, window_bounds = array<i64: 2, 32>}, {pipeline_mode = #tpu.pipeline_mode<synchronous>, transform_indices = @transform_5, window_bounds = array<i64: 2, 32, 64>}, {pipeline_mode = #tpu.pipeline_mode<synchronous>, transform_indices = @transform_6, window_bounds = array<i64: 2, 64>}, {pipeline_mode = #tpu.pipeline_mode<synchronous>, transform_indices = @transform_7, window_bounds = array<i64: 2, 64, 32>}, {pipeline_mode = #tpu.pipeline_mode<synchronous>, transform_indices = @transform_8, window_bounds = array<i64: 2, 32>}, {pipeline_mode = #tpu.pipeline_mode<synchronous>, transform_indices = @transform_9, window_bounds = array<i64: 1, 32>}, {pipeline_mode = #tpu.pipeline_mode<synchronous>, transform_indices = @transform_10, window_bounds = array<i64: 1, 32>}, {pipeline_mode = #tpu.pipeline_mode<synchronous>, transform_indices = @transform_11, window_bounds = array<i64: 32, 128>}, {pipeline_mode = #tpu.pipeline_mode<synchronous>, transform_indices = @transform_12, window_bounds = array<i64: 1, 128>}, {transform_indices = @transform_13, window_bounds = array<i64: 128, 128>}]} {
    %c0 = arith.constant 0 : index
    %c0_0 = arith.constant 0 : index
    %0 = vector.load %arg1[%c0, %c0_0] : memref<128x20xbf16, #tpu.memory_space<vmem>>, vector<128x20xbf16>
    %c0_1 = arith.constant 0 : index
    %c0_2 = arith.constant 0 : index
    %1 = vector.load %arg2[%c0_1, %c0_2] : memref<20x32xbf16, #tpu.memory_space<vmem>>, vector<20x32xbf16>
    %cst = arith.constant dense<0.000000e+00> : vector<128x32xf32>
    %2 = tpu.matmul %0, %1, %cst {dimension_numbers = #tpu.dot_dimension_numbers<[1], [0], [0], [1], [0, 0, 1, 1], [], []>} : vector<128x20xbf16>, vector<20x32xbf16>, vector<128x32xf32> -> vector<128x32xf32>
    %c0_3 = arith.constant 0 : index
    %c0_4 = arith.constant 0 : index
    %3 = vector.load %arg3[%c0_3, %c0_4] : memref<1x32xf32, #tpu.memory_space<vmem>>, vector<1x32xf32>
    %4 = vector.broadcast %3 : vector<1x32xf32> to vector<128x32xf32>
    %5 = arith.addf %2, %4 : vector<128x32xf32>
    %c0_5 = arith.constant 0 : index
    %c0_6 = arith.constant 0 : index
    %6 = vector.load %arg4[%c0_5, %c0_6] : memref<2x32xf32, #tpu.memory_space<vmem>>, vector<1x32xf32>
    %c0_7 = arith.constant 0 : index
    %c0_8 = arith.constant 0 : index
    %7 = vector.load %arg5[%c0_7, %c0_8] : memref<2x32xf32, #tpu.memory_space<vmem>>, vector<1x32xf32>
    %cst_9 = arith.constant dense<0.000000e+00> : vector<128xf32>
    %8 = vector.multi_reduction <add>, %5, %cst_9 [1] : vector<128x32xf32> to vector<128xf32>
    %9 = vector.shape_cast %8 : vector<128xf32> to vector<128x1xf32>
    %10 = arith.mulf %5, %5 : vector<128x32xf32>
    %cst_10 = arith.constant dense<0.000000e+00> : vector<128xf32>
    %11 = vector.multi_reduction <add>, %10, %cst_10 [1] : vector<128x32xf32> to vector<128xf32>
    %12 = vector.shape_cast %11 : vector<128xf32> to vector<128x1xf32>
    %cst_11 = arith.constant 3.125000e-02 : f32
    %13 = vector.broadcast %cst_11 : f32 to vector<128x1xf32>
    %14 = arith.mulf %9, %13 : vector<128x1xf32>
    %cst_12 = arith.constant 3.125000e-02 : f32
    %15 = vector.broadcast %cst_12 : f32 to vector<128x1xf32>
    %16 = arith.mulf %12, %15 : vector<128x1xf32>
    %17 = arith.mulf %14, %14 : vector<128x1xf32>
    %18 = arith.subf %16, %17 : vector<128x1xf32>
    %cst_13 = arith.constant 9.99999974E-6 : f32
    %19 = vector.broadcast %cst_13 : f32 to vector<128x1xf32>
    %20 = arith.addf %18, %19 : vector<128x1xf32>
    %21 = math.rsqrt %20 : vector<128x1xf32>
    %22 = vector.broadcast %14 : vector<128x1xf32> to vector<128x32xf32>
    %23 = arith.subf %5, %22 : vector<128x32xf32>
    %24 = vector.broadcast %21 : vector<128x1xf32> to vector<128x32xf32>
    %25 = arith.mulf %23, %24 : vector<128x32xf32>
    %26 = vector.broadcast %6 : vector<1x32xf32> to vector<128x32xf32>
    %27 = arith.mulf %25, %26 : vector<128x32xf32>
    %28 = vector.broadcast %7 : vector<1x32xf32> to vector<128x32xf32>
    %29 = arith.addf %27, %28 : vector<128x32xf32>
    %30 = arith.truncf %29 : vector<128x32xf32> to vector<128x32xbf16>
    %c0_14 = arith.constant 0 : index
    %c0_15 = arith.constant 0 : index
    %c0_16 = arith.constant 0 : index
    %31 = vector.load %arg6[%c0_14, %c0_15, %c0_16] : memref<2x32x64xbf16, #tpu.memory_space<vmem>>, vector<1x32x64xbf16>
    %32 = vector.shape_cast %31 : vector<1x32x64xbf16> to vector<32x64xbf16>
    %cst_17 = arith.constant dense<0.000000e+00> : vector<128x64xf32>
    %33 = tpu.matmul %30, %32, %cst_17 {dimension_numbers = #tpu.dot_dimension_numbers<[1], [0], [0], [1], [0, 0, 1, 1], [], []>} : vector<128x32xbf16>, vector<32x64xbf16>, vector<128x64xf32> -> vector<128x64xf32>
    %c0_18 = arith.constant 0 : index
    %c0_19 = arith.constant 0 : index
    %34 = vector.load %arg7[%c0_18, %c0_19] : memref<2x64xf32, #tpu.memory_space<vmem>>, vector<1x64xf32>
    %35 = vector.broadcast %34 : vector<1x64xf32> to vector<128x64xf32>
    %36 = arith.addf %33, %35 : vector<128x64xf32>
    %cst_20 = arith.constant 0.000000e+00 : f32
    %37 = vector.broadcast %cst_20 : f32 to vector<128x64xf32>
    %38 = arith.maximumf %36, %37 : vector<128x64xf32>
    %39 = arith.truncf %38 : vector<128x64xf32> to vector<128x64xbf16>
    %c0_21 = arith.constant 0 : index
    %c0_22 = arith.constant 0 : index
    %c0_23 = arith.constant 0 : index
    %40 = vector.load %arg8[%c0_21, %c0_22, %c0_23] : memref<2x64x32xbf16, #tpu.memory_space<vmem>>, vector<1x64x32xbf16>
    %41 = vector.shape_cast %40 : vector<1x64x32xbf16> to vector<64x32xbf16>
    %cst_24 = arith.constant dense<0.000000e+00> : vector<128x32xf32>
    %42 = tpu.matmul %39, %41, %cst_24 {dimension_numbers = #tpu.dot_dimension_numbers<[1], [0], [0], [1], [0, 0, 1, 1], [], []>} : vector<128x64xbf16>, vector<64x32xbf16>, vector<128x32xf32> -> vector<128x32xf32>
    %c0_25 = arith.constant 0 : index
    %c0_26 = arith.constant 0 : index
    %43 = vector.load %arg9[%c0_25, %c0_26] : memref<2x32xf32, #tpu.memory_space<vmem>>, vector<1x32xf32>
    %44 = vector.broadcast %43 : vector<1x32xf32> to vector<128x32xf32>
    %45 = arith.addf %42, %44 : vector<128x32xf32>
    %46 = arith.addf %5, %45 : vector<128x32xf32>
    %c1 = arith.constant 1 : index
    %c0_27 = arith.constant 0 : index
    %47 = vector.load %arg4[%c1, %c0_27] : memref<2x32xf32, #tpu.memory_space<vmem>>, vector<1x32xf32>
    %c1_28 = arith.constant 1 : index
    %c0_29 = arith.constant 0 : index
    %48 = vector.load %arg5[%c1_28, %c0_29] : memref<2x32xf32, #tpu.memory_space<vmem>>, vector<1x32xf32>
    %cst_30 = arith.constant dense<0.000000e+00> : vector<128xf32>
    %49 = vector.multi_reduction <add>, %46, %cst_30 [1] : vector<128x32xf32> to vector<128xf32>
    %50 = vector.shape_cast %49 : vector<128xf32> to vector<128x1xf32>
    %51 = arith.mulf %46, %46 : vector<128x32xf32>
    %cst_31 = arith.constant dense<0.000000e+00> : vector<128xf32>
    %52 = vector.multi_reduction <add>, %51, %cst_31 [1] : vector<128x32xf32> to vector<128xf32>
    %53 = vector.shape_cast %52 : vector<128xf32> to vector<128x1xf32>
    %cst_32 = arith.constant 3.125000e-02 : f32
    %54 = vector.broadcast %cst_32 : f32 to vector<128x1xf32>
    %55 = arith.mulf %50, %54 : vector<128x1xf32>
    %cst_33 = arith.constant 3.125000e-02 : f32
    %56 = vector.broadcast %cst_33 : f32 to vector<128x1xf32>
    %57 = arith.mulf %53, %56 : vector<128x1xf32>
    %58 = arith.mulf %55, %55 : vector<128x1xf32>
    %59 = arith.subf %57, %58 : vector<128x1xf32>
    %cst_34 = arith.constant 9.99999974E-6 : f32
    %60 = vector.broadcast %cst_34 : f32 to vector<128x1xf32>
    %61 = arith.addf %59, %60 : vector<128x1xf32>
    %62 = math.rsqrt %61 : vector<128x1xf32>
    %63 = vector.broadcast %55 : vector<128x1xf32> to vector<128x32xf32>
    %64 = arith.subf %46, %63 : vector<128x32xf32>
    %65 = vector.broadcast %62 : vector<128x1xf32> to vector<128x32xf32>
    %66 = arith.mulf %64, %65 : vector<128x32xf32>
    %67 = vector.broadcast %47 : vector<1x32xf32> to vector<128x32xf32>
    %68 = arith.mulf %66, %67 : vector<128x32xf32>
    %69 = vector.broadcast %48 : vector<1x32xf32> to vector<128x32xf32>
    %70 = arith.addf %68, %69 : vector<128x32xf32>
    %71 = arith.truncf %70 : vector<128x32xf32> to vector<128x32xbf16>
    %c1_35 = arith.constant 1 : index
    %c0_36 = arith.constant 0 : index
    %c0_37 = arith.constant 0 : index
    %72 = vector.load %arg6[%c1_35, %c0_36, %c0_37] : memref<2x32x64xbf16, #tpu.memory_space<vmem>>, vector<1x32x64xbf16>
    %73 = vector.shape_cast %72 : vector<1x32x64xbf16> to vector<32x64xbf16>
    %cst_38 = arith.constant dense<0.000000e+00> : vector<128x64xf32>
    %74 = tpu.matmul %71, %73, %cst_38 {dimension_numbers = #tpu.dot_dimension_numbers<[1], [0], [0], [1], [0, 0, 1, 1], [], []>} : vector<128x32xbf16>, vector<32x64xbf16>, vector<128x64xf32> -> vector<128x64xf32>
    %c1_39 = arith.constant 1 : index
    %c0_40 = arith.constant 0 : index
    %75 = vector.load %arg7[%c1_39, %c0_40] : memref<2x64xf32, #tpu.memory_space<vmem>>, vector<1x64xf32>
    %76 = vector.broadcast %75 : vector<1x64xf32> to vector<128x64xf32>
    %77 = arith.addf %74, %76 : vector<128x64xf32>
    %cst_41 = arith.constant 0.000000e+00 : f32
    %78 = vector.broadcast %cst_41 : f32 to vector<128x64xf32>
    %79 = arith.maximumf %77, %78 : vector<128x64xf32>
    %80 = arith.truncf %79 : vector<128x64xf32> to vector<128x64xbf16>
    %c1_42 = arith.constant 1 : index
    %c0_43 = arith.constant 0 : index
    %c0_44 = arith.constant 0 : index
    %81 = vector.load %arg8[%c1_42, %c0_43, %c0_44] : memref<2x64x32xbf16, #tpu.memory_space<vmem>>, vector<1x64x32xbf16>
    %82 = vector.shape_cast %81 : vector<1x64x32xbf16> to vector<64x32xbf16>
    %cst_45 = arith.constant dense<0.000000e+00> : vector<128x32xf32>
    %83 = tpu.matmul %80, %82, %cst_45 {dimension_numbers = #tpu.dot_dimension_numbers<[1], [0], [0], [1], [0, 0, 1, 1], [], []>} : vector<128x64xbf16>, vector<64x32xbf16>, vector<128x32xf32> -> vector<128x32xf32>
    %c1_46 = arith.constant 1 : index
    %c0_47 = arith.constant 0 : index
    %84 = vector.load %arg9[%c1_46, %c0_47] : memref<2x32xf32, #tpu.memory_space<vmem>>, vector<1x32xf32>
    %85 = vector.broadcast %84 : vector<1x32xf32> to vector<128x32xf32>
    %86 = arith.addf %83, %85 : vector<128x32xf32>
    %87 = arith.addf %46, %86 : vector<128x32xf32>
    %c0_48 = arith.constant 0 : index
    %c0_49 = arith.constant 0 : index
    %88 = vector.load %arg10[%c0_48, %c0_49] : memref<1x32xf32, #tpu.memory_space<vmem>>, vector<1x32xf32>
    %c0_50 = arith.constant 0 : index
    %c0_51 = arith.constant 0 : index
    %89 = vector.load %arg11[%c0_50, %c0_51] : memref<1x32xf32, #tpu.memory_space<vmem>>, vector<1x32xf32>
    %cst_52 = arith.constant dense<0.000000e+00> : vector<128xf32>
    %90 = vector.multi_reduction <add>, %87, %cst_52 [1] : vector<128x32xf32> to vector<128xf32>
    %91 = vector.shape_cast %90 : vector<128xf32> to vector<128x1xf32>
    %92 = arith.mulf %87, %87 : vector<128x32xf32>
    %cst_53 = arith.constant dense<0.000000e+00> : vector<128xf32>
    %93 = vector.multi_reduction <add>, %92, %cst_53 [1] : vector<128x32xf32> to vector<128xf32>
    %94 = vector.shape_cast %93 : vector<128xf32> to vector<128x1xf32>
    %cst_54 = arith.constant 3.125000e-02 : f32
    %95 = vector.broadcast %cst_54 : f32 to vector<128x1xf32>
    %96 = arith.mulf %91, %95 : vector<128x1xf32>
    %cst_55 = arith.constant 3.125000e-02 : f32
    %97 = vector.broadcast %cst_55 : f32 to vector<128x1xf32>
    %98 = arith.mulf %94, %97 : vector<128x1xf32>
    %99 = arith.mulf %96, %96 : vector<128x1xf32>
    %100 = arith.subf %98, %99 : vector<128x1xf32>
    %cst_56 = arith.constant 9.99999974E-6 : f32
    %101 = vector.broadcast %cst_56 : f32 to vector<128x1xf32>
    %102 = arith.addf %100, %101 : vector<128x1xf32>
    %103 = math.rsqrt %102 : vector<128x1xf32>
    %104 = vector.broadcast %96 : vector<128x1xf32> to vector<128x32xf32>
    %105 = arith.subf %87, %104 : vector<128x32xf32>
    %106 = vector.broadcast %103 : vector<128x1xf32> to vector<128x32xf32>
    %107 = arith.mulf %105, %106 : vector<128x32xf32>
    %108 = vector.broadcast %88 : vector<1x32xf32> to vector<128x32xf32>
    %109 = arith.mulf %107, %108 : vector<128x32xf32>
    %110 = vector.broadcast %89 : vector<1x32xf32> to vector<128x32xf32>
    %111 = arith.addf %109, %110 : vector<128x32xf32>
    %cst_57 = arith.constant 0.000000e+00 : f32
    %112 = vector.broadcast %cst_57 : f32 to vector<128x32xf32>
    %113 = arith.maximumf %111, %112 : vector<128x32xf32>
    %114 = arith.truncf %113 : vector<128x32xf32> to vector<128x32xbf16>
    %c0_58 = arith.constant 0 : index
    %c0_59 = arith.constant 0 : index
    %115 = vector.load %arg12[%c0_58, %c0_59] : memref<32x128xbf16, #tpu.memory_space<vmem>>, vector<32x128xbf16>
    %cst_60 = arith.constant dense<0.000000e+00> : vector<128x128xf32>
    %116 = tpu.matmul %114, %115, %cst_60 {dimension_numbers = #tpu.dot_dimension_numbers<[1], [0], [0], [1], [0, 0, 1, 1], [], []>} : vector<128x32xbf16>, vector<32x128xbf16>, vector<128x128xf32> -> vector<128x128xf32>
    %c0_61 = arith.constant 0 : index
    %c0_62 = arith.constant 0 : index
    %117 = vector.load %arg13[%c0_61, %c0_62] : memref<1x128xf32, #tpu.memory_space<vmem>>, vector<1x128xf32>
    %118 = vector.broadcast %117 : vector<1x128xf32> to vector<128x128xf32>
    %119 = arith.addf %116, %118 : vector<128x128xf32>
    %c0_63 = arith.constant 0 : index
    %c0_64 = arith.constant 0 : index
    %120 = vector.load %arg14[%c0_63, %c0_64] : memref<128x128xf32, #tpu.memory_space<vmem>>, vector<128x128xf32>
    tpu.vector_store %arg14[%c0_63, %c0_64], %119 {strides = array<i32>} : memref<128x128xf32, #tpu.memory_space<vmem>>, vector<128x128xf32>,
    return
  }
  func.func @transform_0(%arg0: i32) -> (i32, i32) {
    %c0_i32 = arith.constant 0 : i32
    %c0_i32_0 = arith.constant 0 : i32
    return %arg0, %c0_i32 : i32, i32
  }
  func.func @transform_1(%arg0: i32) -> (i32, i32) {
    %c0_i32 = arith.constant 0 : i32
    %c0_i32_0 = arith.constant 0 : i32
    %c0_i32_1 = arith.constant 0 : i32
    return %c0_i32, %c0_i32_0 : i32, i32
  }
  func.func @transform_2(%arg0: i32) -> (i32, i32) {
    %c0_i32 = arith.constant 0 : i32
    %c0_i32_0 = arith.constant 0 : i32
    %c0_i32_1 = arith.constant 0 : i32
    return %c0_i32, %c0_i32_0 : i32, i32
  }
  func.func @transform_3(%arg0: i32) -> (i32, i32) {
    %c0_i32 = arith.constant 0 : i32
    %c0_i32_0 = arith.constant 0 : i32
    %c0_i32_1 = arith.constant 0 : i32
    return %c0_i32, %c0_i32_0 : i32, i32
  }
  func.func @transform_4(%arg0: i32) -> (i32, i32) {
    %c0_i32 = arith.constant 0 : i32
    %c0_i32_0 = arith.constant 0 : i32
    %c0_i32_1 = arith.constant 0 : i32
    return %c0_i32, %c0_i32_0 : i32, i32
  }
  func.func @transform_5(%arg0: i32) -> (i32, i32, i32) {
    %c0_i32 = arith.constant 0 : i32
    %c0_i32_0 = arith.constant 0 : i32
    %c0_i32_1 = arith.constant 0 : i32
    %c0_i32_2 = arith.constant 0 : i32
    return %c0_i32, %c0_i32_0, %c0_i32_1 : i32, i32, i32
  }
  func.func @transform_6(%arg0: i32) -> (i32, i32) {
    %c0_i32 = arith.constant 0 : i32
    %c0_i32_0 = arith.constant 0 : i32
    %c0_i32_1 = arith.constant 0 : i32
    return %c0_i32, %c0_i32_0 : i32, i32
  }
  func.func @transform_7(%arg0: i32) -> (i32, i32, i32) {
    %c0_i32 = arith.constant 0 : i32
    %c0_i32_0 = arith.constant 0 : i32
    %c0_i32_1 = arith.constant 0 : i32
    %c0_i32_2 = arith.constant 0 : i32
    return %c0_i32, %c0_i32_0, %c0_i32_1 : i32, i32, i32
  }
  func.func @transform_8(%arg0: i32) -> (i32, i32) {
    %c0_i32 = arith.constant 0 : i32
    %c0_i32_0 = arith.constant 0 : i32
    %c0_i32_1 = arith.constant 0 : i32
    return %c0_i32, %c0_i32_0 : i32, i32
  }
  func.func @transform_9(%arg0: i32) -> (i32, i32) {
    %c0_i32 = arith.constant 0 : i32
    %c0_i32_0 = arith.constant 0 : i32
    %c0_i32_1 = arith.constant 0 : i32
    return %c0_i32, %c0_i32_0 : i32, i32
  }
  func.func @transform_10(%arg0: i32) -> (i32, i32) {
    %c0_i32 = arith.constant 0 : i32
    %c0_i32_0 = arith.constant 0 : i32
    %c0_i32_1 = arith.constant 0 : i32
    return %c0_i32, %c0_i32_0 : i32, i32
  }
  func.func @transform_11(%arg0: i32) -> (i32, i32) {
    %c0_i32 = arith.constant 0 : i32
    %c0_i32_0 = arith.constant 0 : i32
    %c0_i32_1 = arith.constant 0 : i32
    return %c0_i32, %c0_i32_0 : i32, i32
  }
  func.func @transform_12(%arg0: i32) -> (i32, i32) {
    %c0_i32 = arith.constant 0 : i32
    %c0_i32_0 = arith.constant 0 : i32
    %c0_i32_1 = arith.constant 0 : i32
    return %c0_i32, %c0_i32_0 : i32, i32
  }
  func.func @transform_13(%arg0: i32) -> (i32, i32) {
    %c0_i32 = arith.constant 0 : i32
    %c0_i32_0 = arith.constant 0 : i32
    return %arg0, %c0_i32 : i32, i32
  }
}

</mosaic_0001>

<llo_original>
// kernel: tpu_custom_call.1
$region0: #{tpu_custom_call.1}
  #allocation0 [shape = 'u32[]', space=smem, size = 0x4, offset = 0x4, fixed_abs, tag = 'smem constant byte address 0x4 - core index']
  #allocation1 [shape = 'u32[72,128]{1,0:T(1,128)}', space=vmem, size = 0x9000, scoped, tag = 'internal scratch']
  %s0 = inlined_call_operand.vmem [shape: bf16[256,20], index: 0, kind: input, shape index: {}]
  %s1 = inlined_call_operand.vmem [shape: bf16[20,32], index: 1, kind: input, shape index: {}]
  %s2 = inlined_call_operand.vmem [shape: f32[1,32], index: 2, kind: input, shape index: {}]
  %s3 = inlined_call_operand.vmem [shape: f32[2,32], index: 3, kind: input, shape index: {}]
  %s4 = inlined_call_operand.vmem [shape: f32[2,32], index: 4, kind: input, shape index: {}]
  %s5 = inlined_call_operand.vmem [shape: bf16[2,32,64], index: 5, kind: input, shape index: {}]
  %s6 = inlined_call_operand.vmem [shape: f32[2,64], index: 6, kind: input, shape index: {}]
  %s7 = inlined_call_operand.vmem [shape: bf16[2,64,32], index: 7, kind: input, shape index: {}]
  %s8 = inlined_call_operand.vmem [shape: f32[2,32], index: 8, kind: input, shape index: {}]
  %s9 = inlined_call_operand.vmem [shape: f32[1,32], index: 9, kind: input, shape index: {}]
  %s10 = inlined_call_operand.vmem [shape: f32[1,32], index: 10, kind: input, shape index: {}]
  %s11 = inlined_call_operand.vmem [shape: bf16[32,128], index: 11, kind: input, shape index: {}]
  %s12 = inlined_call_operand.vmem [shape: f32[1,128], index: 12, kind: input, shape index: {}]
  %s13 = inlined_call_operand.hbm [shape: f32[256,128], index: 13, kind: output, shape index: {}]
  %s14 = sld [smem:[#allocation0]]
  $region85: #{tpu_custom_call.1} parent=0
    _
  %s16 = ssub.s32 1, %s14
  %s17 = scalar_select 0, %s16, %s14
  $region1: #{tpu_custom_call.1} parent=0
    #allocation2 [shape = 'u8[131072]{0}', space=vmem, size = 0x20000, scoped, tag = 'output window, operand 0']
    #allocation3 [shape = 's32[2]{0}', space=sflag, size = 0x8, scoped, tag = 'scoped memory for tpu_custom_call.1']
    %18 = vsyncpa [#allocation3], 0
    %s19 = scalar_lea.sflag [#allocation3], 1
    %20 = vsyncpa %s19, 0
    loop: start=0, step=1, limit=4
    $region2: #{tpu_custom_call.1} parent=1 // loop_pre_header
      _
    $region3: #{tpu_custom_call.1} parent=1 // loop_header
      %s22 = sphi 0, %s26
      %p23 = scmp.ge.s32.totalorder %s22, 4
      %s32 = sphi 0, %s34
      %s35 = sphi 0, %s32
      %s36 = sphi 0, %s35
      %s52 = sphi 0, %s36
      %s56 = sphi 0, %s56
      %s58 = sphi 0, %s56
      %s59 = sphi 0, %s58
      %s73 = sphi 0, %s59
      %s77 = sphi 0, %s77
      %s79 = sphi 0, %s77
      %s80 = sphi 0, %s79
      %s94 = sphi 0, %s80
      %s98 = sphi 0, %s98
      %s100 = sphi 0, %s98
      %s101 = sphi 0, %s100
      %s115 = sphi 0, %s101
      %s119 = sphi 0, %s119
      %s121 = sphi 0, %s119
      %s122 = sphi 0, %s121
      %s136 = sphi 0, %s122
      %s140 = sphi 0, %s140
      %s142 = sphi 0, %s140
      %s143 = sphi 0, %s142
      %s157 = sphi 0, %s143
      %s161 = sphi 0, %s161
      %s163 = sphi 0, %s161
      %s164 = sphi 0, %s163
      %s178 = sphi 0, %s164
      %s182 = sphi 0, %s182
      %s184 = sphi 0, %s182
      %s185 = sphi 0, %s184
      %s199 = sphi 0, %s185
      %s203 = sphi 0, %s203
      %s205 = sphi 0, %s203
      %s206 = sphi 0, %s205
      %s220 = sphi 0, %s206
      %s224 = sphi 0, %s224
      %s226 = sphi 0, %s224
      %s227 = sphi 0, %s226
      %s241 = sphi 0, %s227
      %s245 = sphi 0, %s245
      %s247 = sphi 0, %s245
      %s248 = sphi 0, %s247
      %s262 = sphi 0, %s248
      %s266 = sphi 0, %s266
      %s268 = sphi 0, %s266
      %s269 = sphi 0, %s268
      %s283 = sphi 0, %s269
      %s287 = sphi 0, %s287
      %s289 = sphi 0, %s287
      %s290 = sphi 0, %s289
      %s304 = sphi 0, %s290
      %s310 = sphi 0, %s312
      %s313 = sphi 0, %s310
      %s314 = sphi 0, %s313
      %s330 = sphi 0, %s314
    $region4: #{tpu_custom_call.1} parent=1 // loop_header_branch
      %25 = sbr.rel (%p23) target = $region8
    $region5: #{tpu_custom_call.1} parent=1 // loop_body
      %s27 = ssub.s32 %s22, 1
      %s28 = ssub.s32 %s22, 2
      %s29 = sadd.s32 %s22, 1
      %s30 = ssub.s32 %s22, %s29
      %p31 = scmp.eq.s32.totalorder %s30, 0
      %s33 = sadd.s32 %s32, 1
      %s34 = scalar_select %p31, %s32, %s33
      %p37 = pneg %p31
      %p38 = scmp.eq.s32.totalorder %s22, 1
      %p39 = por %p37, %p38
      %p40 = scmp.ne.s32.totalorder %s32, %s35
      %p41 = scmp.eq.s32.totalorder %s22, 0
      %p42 = por %p40, %p41
      %p43 = scmp.ne.s32.totalorder %s32, %s35
      %p44 = scmp.eq.s32.totalorder %s27, 1
      %p45 = por %p43, %p44
      %p46 = scmp.ne.s32.totalorder %s35, %s36
      %p47 = scmp.eq.s32.totalorder %s27, 0
      %p48 = por %p46, %p47
      %p49 = scmp.ne.s32.totalorder %s35, %s36
      %p50 = scmp.eq.s32.totalorder %s28, 1
      %p51 = por %p49, %p50
      %p53 = scmp.ne.s32.totalorder %s36, %s52
      %p54 = scmp.eq.s32.totalorder %s28, 0
      %p55 = por %p53, %p54
      %s57 = sadd.s32 %s56, 1
      %p60 = scmp.eq.s32.totalorder %s22, 1
      %p61 = scmp.ne.s32.totalorder %s56, %s58
      %p62 = scmp.eq.s32.totalorder %s22, 0
      %p63 = por %p61, %p62
      %p64 = scmp.ne.s32.totalorder %s56, %s58
      %p65 = scmp.eq.s32.totalorder %s27, 1
      %p66 = por %p64, %p65
      %p67 = scmp.ne.s32.totalorder %s58, %s59
      %p68 = scmp.eq.s32.totalorder %s27, 0
      %p69 = por %p67, %p68
      %p70 = scmp.ne.s32.totalorder %s58, %s59
      %p71 = scmp.eq.s32.totalorder %s28, 1
      %p72 = por %p70, %p71
      %p74 = scmp.ne.s32.totalorder %s59, %s73
      %p75 = scmp.eq.s32.totalorder %s28, 0
      %p76 = por %p74, %p75
      %s78 = sadd.s32 %s77, 1
      %p81 = scmp.eq.s32.totalorder %s22, 1
      %p82 = scmp.ne.s32.totalorder %s77, %s79
      %p83 = scmp.eq.s32.totalorder %s22, 0
      %p84 = por %p82, %p83
      %p85 = scmp.ne.s32.totalorder %s77, %s79
      %p86 = scmp.eq.s32.totalorder %s27, 1
      %p87 = por %p85, %p86
      %p88 = scmp.ne.s32.totalorder %s79, %s80
      %p89 = scmp.eq.s32.totalorder %s27, 0
      %p90 = por %p88, %p89
      %p91 = scmp.ne.s32.totalorder %s79, %s80
      %p92 = scmp.eq.s32.totalorder %s28, 1
      %p93 = por %p91, %p92
      %p95 = scmp.ne.s32.totalorder %s80, %s94
      %p96 = scmp.eq.s32.totalorder %s28, 0
      %p97 = por %p95, %p96
      %s99 = sadd.s32 %s98, 1
      %p102 = scmp.eq.s32.totalorder %s22, 1
      %p103 = scmp.ne.s32.totalorder %s98, %s100
      %p104 = scmp.eq.s32.totalorder %s22, 0
      %p105 = por %p103, %p104
      %p106 = scmp.ne.s32.totalorder %s98, %s100
      %p107 = scmp.eq.s32.totalorder %s27, 1
      %p108 = por %p106, %p107
      %p109 = scmp.ne.s32.totalorder %s100, %s101
      %p110 = scmp.eq.s32.totalorder %s27, 0
      %p111 = por %p109, %p110
      %p112 = scmp.ne.s32.totalorder %s100, %s101
      %p113 = scmp.eq.s32.totalorder %s28, 1
      %p114 = por %p112, %p113
      %p116 = scmp.ne.s32.totalorder %s101, %s115
      %p117 = scmp.eq.s32.totalorder %s28, 0
      %p118 = por %p116, %p117
      %s120 = sadd.s32 %s119, 1
      %p123 = scmp.eq.s32.totalorder %s22, 1
      %p124 = scmp.ne.s32.totalorder %s119, %s121
      %p125 = scmp.eq.s32.totalorder %s22, 0
      %p126 = por %p124, %p125
      %p127 = scmp.ne.s32.totalorder %s119, %s121
      %p128 = scmp.eq.s32.totalorder %s27, 1
      %p129 = por %p127, %p128
      %p130 = scmp.ne.s32.totalorder %s121, %s122
      %p131 = scmp.eq.s32.totalorder %s27, 0
      %p132 = por %p130, %p131
      %p133 = scmp.ne.s32.totalorder %s121, %s122
      %p134 = scmp.eq.s32.totalorder %s28, 1
      %p135 = por %p133, %p134
      %p137 = scmp.ne.s32.totalorder %s122, %s136
      %p138 = scmp.eq.s32.totalorder %s28, 0
      %p139 = por %p137, %p138
      %s141 = sadd.s32 %s140, 1
      %p144 = scmp.eq.s32.totalorder %s22, 1
      %p145 = scmp.ne.s32.totalorder %s140, %s142
      %p146 = scmp.eq.s32.totalorder %s22, 0
      %p147 = por %p145, %p146
      %p148 = scmp.ne.s32.totalorder %s140, %s142
      %p149 = scmp.eq.s32.totalorder %s27, 1
      %p150 = por %p148, %p149
      %p151 = scmp.ne.s32.totalorder %s142, %s143
      %p152 = scmp.eq.s32.totalorder %s27, 0
      %p153 = por %p151, %p152
      %p154 = scmp.ne.s32.totalorder %s142, %s143
      %p155 = scmp.eq.s32.totalorder %s28, 1
      %p156 = por %p154, %p155
      %p158 = scmp.ne.s32.totalorder %s143, %s157
      %p159 = scmp.eq.s32.totalorder %s28, 0
      %p160 = por %p158, %p159
      %s162 = sadd.s32 %s161, 1
      %p165 = scmp.eq.s32.totalorder %s22, 1
      %p166 = scmp.ne.s32.totalorder %s161, %s163
      %p167 = scmp.eq.s32.totalorder %s22, 0
      %p168 = por %p166, %p167
      %p169 = scmp.ne.s32.totalorder %s161, %s163
      %p170 = scmp.eq.s32.totalorder %s27, 1
      %p171 = por %p169, %p170
      %p172 = scmp.ne.s32.totalorder %s163, %s164
      %p173 = scmp.eq.s32.totalorder %s27, 0
      %p174 = por %p172, %p173
      %p175 = scmp.ne.s32.totalorder %s163, %s164
      %p176 = scmp.eq.s32.totalorder %s28, 1
      %p177 = por %p175, %p176
      %p179 = scmp.ne.s32.totalorder %s164, %s178
      %p180 = scmp.eq.s32.totalorder %s28, 0
      %p181 = por %p179, %p180
      %s183 = sadd.s32 %s182, 1
      %p186 = scmp.eq.s32.totalorder %s22, 1
      %p187 = scmp.ne.s32.totalorder %s182, %s184
      %p188 = scmp.eq.s32.totalorder %s22, 0
      %p189 = por %p187, %p188
      %p190 = scmp.ne.s32.totalorder %s182, %s184
      %p191 = scmp.eq.s32.totalorder %s27, 1
      %p192 = por %p190, %p191
      %p193 = scmp.ne.s32.totalorder %s184, %s185
      %p194 = scmp.eq.s32.totalorder %s27, 0
      %p195 = por %p193, %p194
      %p196 = scmp.ne.s32.totalorder %s184, %s185
      %p197 = scmp.eq.s32.totalorder %s28, 1
      %p198 = por %p196, %p197
      %p200 = scmp.ne.s32.totalorder %s185, %s199
      %p201 = scmp.eq.s32.totalorder %s28, 0
      %p202 = por %p200, %p201
      %s204 = sadd.s32 %s203, 1
      %p207 = scmp.eq.s32.totalorder %s22, 1
      %p208 = scmp.ne.s32.totalorder %s203, %s205
      %p209 = scmp.eq.s32.totalorder %s22, 0
      %p210 = por %p208, %p209
      %p211 = scmp.ne.s32.totalorder %s203, %s205
      %p212 = scmp.eq.s32.totalorder %s27, 1
      %p213 = por %p211, %p212
      %p214 = scmp.ne.s32.totalorder %s205, %s206
      %p215 = scmp.eq.s32.totalorder %s27, 0
      %p216 = por %p214, %p215
      %p217 = scmp.ne.s32.totalorder %s205, %s206
      %p218 = scmp.eq.s32.totalorder %s28, 1
      %p219 = por %p217, %p218
      %p221 = scmp.ne.s32.totalorder %s206, %s220
      %p222 = scmp.eq.s32.totalorder %s28, 0
      %p223 = por %p221, %p222
      %s225 = sadd.s32 %s224, 1
      %p228 = scmp.eq.s32.totalorder %s22, 1
      %p229 = scmp.ne.s32.totalorder %s224, %s226
      %p230 = scmp.eq.s32.totalorder %s22, 0
      %p231 = por %p229, %p230
      %p232 = scmp.ne.s32.totalorder %s224, %s226
      %p233 = scmp.eq.s32.totalorder %s27, 1
      %p234 = por %p232, %p233
      %p235 = scmp.ne.s32.totalorder %s226, %s227
      %p236 = scmp.eq.s32.totalorder %s27, 0
      %p237 = por %p235, %p236
      %p238 = scmp.ne.s32.totalorder %s226, %s227
      %p239 = scmp.eq.s32.totalorder %s28, 1
      %p240 = por %p238, %p239
      %p242 = scmp.ne.s32.totalorder %s227, %s241
      %p243 = scmp.eq.s32.totalorder %s28, 0
      %p244 = por %p242, %p243
      %s246 = sadd.s32 %s245, 1
      %p249 = scmp.eq.s32.totalorder %s22, 1
      %p250 = scmp.ne.s32.totalorder %s245, %s247
      %p251 = scmp.eq.s32.totalorder %s22, 0
      %p252 = por %p250, %p251
      %p253 = scmp.ne.s32.totalorder %s245, %s247
      %p254 = scmp.eq.s32.totalorder %s27, 1
      %p255 = por %p253, %p254
      %p256 = scmp.ne.s32.totalorder %s247, %s248
      %p257 = scmp.eq.s32.totalorder %s27, 0
      %p258 = por %p256, %p257
      %p259 = scmp.ne.s32.totalorder %s247, %s248
      %p260 = scmp.eq.s32.totalorder %s28, 1
      %p261 = por %p259, %p260
      %p263 = scmp.ne.s32.totalorder %s248, %s262
      %p264 = scmp.eq.s32.totalorder %s28, 0
      %p265 = por %p263, %p264
      %s267 = sadd.s32 %s266, 1
      %p270 = scmp.eq.s32.totalorder %s22, 1
      %p271 = scmp.ne.s32.totalorder %s266, %s268
      %p272 = scmp.eq.s32.totalorder %s22, 0
      %p273 = por %p271, %p272
      %p274 = scmp.ne.s32.totalorder %s266, %s268
      %p275 = scmp.eq.s32.totalorder %s27, 1
      %p276 = por %p274, %p275
      %p277 = scmp.ne.s32.totalorder %s268, %s269
      %p278 = scmp.eq.s32.totalorder %s27, 0
      %p279 = por %p277, %p278
      %p280 = scmp.ne.s32.totalorder %s268, %s269
      %p281 = scmp.eq.s32.totalorder %s28, 1
      %p282 = por %p280, %p281
      %p284 = scmp.ne.s32.totalorder %s269, %s283
      %p285 = scmp.eq.s32.totalorder %s28, 0
      %p286 = por %p284, %p285
      %s288 = sadd.s32 %s287, 1
      %p291 = scmp.eq.s32.totalorder %s22, 1
      %p292 = scmp.ne.s32.totalorder %s287, %s289
      %p293 = scmp.eq.s32.totalorder %s22, 0
      %p294 = por %p292, %p293
      %p295 = scmp.ne.s32.totalorder %s287, %s289
      %p296 = scmp.eq.s32.totalorder %s27, 1
      %p297 = por %p295, %p296
      %p298 = scmp.ne.s32.totalorder %s289, %s290
      %p299 = scmp.eq.s32.totalorder %s27, 0
      %p300 = por %p298, %p299
      %p301 = scmp.ne.s32.totalorder %s289, %s290
      %p302 = scmp.eq.s32.totalorder %s28, 1
      %p303 = por %p301, %p302
      %p305 = scmp.ne.s32.totalorder %s290, %s304
      %p306 = scmp.eq.s32.totalorder %s28, 0
      %p307 = por %p305, %p306
      %s308 = ssub.s32 %s22, %s29
      %p309 = scmp.eq.s32.totalorder %s308, 0
      %s311 = sadd.s32 %s310, 1
      %s312 = scalar_select %p309, %s310, %s311
      %p315 = pneg %p309
      %p316 = scmp.eq.s32.totalorder %s22, 1
      %p317 = por %p315, %p316
      %p318 = scmp.ne.s32.totalorder %s310, %s313
      %p319 = scmp.eq.s32.totalorder %s22, 0
      %p320 = por %p318, %p319
      %p321 = scmp.ne.s32.totalorder %s310, %s313
      %p322 = scmp.eq.s32.totalorder %s27, 1
      %p323 = por %p321, %p322
      %p324 = scmp.ne.s32.totalorder %s313, %s314
      %p325 = scmp.eq.s32.totalorder %s27, 0
      %p326 = por %p324, %p325
      %p327 = scmp.ne.s32.totalorder %s313, %s314
      %p328 = scmp.eq.s32.totalorder %s28, 1
      %p329 = por %p327, %p328
      %p331 = scmp.ne.s32.totalorder %s314, %s330
      %p332 = scmp.eq.s32.totalorder %s28, 0
      %p333 = por %p331, %p332
      %p334 = scmp.le.s32.totalorder 1, %s22
      %p335 = scmp.lt.s32.totalorder %s22, 3
      %p336 = pnand %p334, %p335
      %p337 = pneg %p336
      // Predicated region
      $region9: #{tpu_custom_call.1} parent=5 // pred_check
        _
      $region10: #{tpu_custom_call.1} parent=5 // pred_check_branch
        %339 = sbr.rel (%p336) target = $region12
      $region11: #{tpu_custom_call.1} parent=5 // pred_region
        %s340 = ssub.s32 %s22, 1
        // Predicated region
        $region13: #{tpu_custom_call.1} parent=11 // pred_check
          %p341 = pneg %p69
        $region14: #{tpu_custom_call.1} parent=11 // pred_check_branch
          %343 = sbr.rel (%p341) target = $region16
        $region15: #{tpu_custom_call.1} parent=11 // pred_region
          _
        $region16: #{tpu_custom_call.1} parent=11 // pred_fallthru
          _
        // Predicated region
        $region17: #{tpu_custom_call.1} parent=11 // pred_check
          %p344 = pneg %p90
        $region18: #{tpu_custom_call.1} parent=11 // pred_check_branch
          %346 = sbr.rel (%p344) target = $region20
        $region19: #{tpu_custom_call.1} parent=11 // pred_region
          _
        $region20: #{tpu_custom_call.1} parent=11 // pred_fallthru
          _
        // Predicated region
        $region21: #{tpu_custom_call.1} parent=11 // pred_check
          %p347 = pneg %p111
        $region22: #{tpu_custom_call.1} parent=11 // pred_check_branch
          %349 = sbr.rel (%p347) target = $region24
        $region23: #{tpu_custom_call.1} parent=11 // pred_region
          _
        $region24: #{tpu_custom_call.1} parent=11 // pred_fallthru
          _
        // Predicated region
        $region25: #{tpu_custom_call.1} parent=11 // pred_check
          %p350 = pneg %p132
        $region26: #{tpu_custom_call.1} parent=11 // pred_check_branch
          %352 = sbr.rel (%p350) target = $region28
        $region27: #{tpu_custom_call.1} parent=11 // pred_region
          _
        $region28: #{tpu_custom_call.1} parent=11 // pred_fallthru
          _
        // Predicated region
        $region29: #{tpu_custom_call.1} parent=11 // pred_check
          %p353 = pneg %p153
        $region30: #{tpu_custom_call.1} parent=11 // pred_check_branch
          %355 = sbr.rel (%p353) target = $region32
        $region31: #{tpu_custom_call.1} parent=11 // pred_region
          _
        $region32: #{tpu_custom_call.1} parent=11 // pred_fallthru
          _
        // Predicated region
        $region33: #{tpu_custom_call.1} parent=11 // pred_check
          %p356 = pneg %p174
        $region34: #{tpu_custom_call.1} parent=11 // pred_check_branch
          %358 = sbr.rel (%p356) target = $region36
        $region35: #{tpu_custom_call.1} parent=11 // pred_region
          _
        $region36: #{tpu_custom_call.1} parent=11 // pred_fallthru
          _
        // Predicated region
        $region37: #{tpu_custom_call.1} parent=11 // pred_check
          %p359 = pneg %p195
        $region38: #{tpu_custom_call.1} parent=11 // pred_check_branch
          %361 = sbr.rel (%p359) target = $region40
        $region39: #{tpu_custom_call.1} parent=11 // pred_region
          _
        $region40: #{tpu_custom_call.1} parent=11 // pred_fallthru
          _
        // Predicated region
        $region41: #{tpu_custom_call.1} parent=11 // pred_check
          %p362 = pneg %p216
        $region42: #{tpu_custom_call.1} parent=11 // pred_check_branch
          %364 = sbr.rel (%p362) target = $region44
        $region43: #{tpu_custom_call.1} parent=11 // pred_region
          _
        $region44: #{tpu_custom_call.1} parent=11 // pred_fallthru
          _
        // Predicated region
        $region45: #{tpu_custom_call.1} parent=11 // pred_check
          %p365 = pneg %p237
        $region46: #{tpu_custom_call.1} parent=11 // pred_check_branch
          %367 = sbr.rel (%p365) target = $region48
        $region47: #{tpu_custom_call.1} parent=11 // pred_region
          _
        $region48: #{tpu_custom_call.1} parent=11 // pred_fallthru
          _
        // Predicated region
        $region49: #{tpu_custom_call.1} parent=11 // pred_check
          %p368 = pneg %p258
        $region50: #{tpu_custom_call.1} parent=11 // pred_check_branch
          %370 = sbr.rel (%p368) target = $region52
        $region51: #{tpu_custom_call.1} parent=11 // pred_region
          _
        $region52: #{tpu_custom_call.1} parent=11 // pred_fallthru
          _
        // Predicated region
        $region53: #{tpu_custom_call.1} parent=11 // pred_check
          %p371 = pneg %p279
        $region54: #{tpu_custom_call.1} parent=11 // pred_check_branch
          %373 = sbr.rel (%p371) target = $region56
        $region55: #{tpu_custom_call.1} parent=11 // pred_region
          _
        $region56: #{tpu_custom_call.1} parent=11 // pred_fallthru
          _
        // Predicated region
        $region57: #{tpu_custom_call.1} parent=11 // pred_check
          %p374 = pneg %p300
        $region58: #{tpu_custom_call.1} parent=11 // pred_check_branch
          %376 = sbr.rel (%p374) target = $region60
        $region59: #{tpu_custom_call.1} parent=11 // pred_region
          _
        $region60: #{tpu_custom_call.1} parent=11 // pred_fallthru
          _
      $region12: #{tpu_custom_call.1} parent=5 // pred_fallthru
        _
      %p377 = scmp.lt.s32.totalorder %s22, 2
      // Predicated region
      $region61: #{tpu_custom_call.1} parent=5 // pred_check
        %p378 = pneg %p377
      $region62: #{tpu_custom_call.1} parent=5 // pred_check_branch
        %380 = sbr.rel (%p378) target = $region64
      $region63: #{tpu_custom_call.1} parent=5 // pred_region
        // Predicated region
        $region65: #{tpu_custom_call.1} parent=63 // pred_check
          %p381 = pneg %p42
        $region66: #{tpu_custom_call.1} parent=63 // pred_check_branch
          %383 = sbr.rel (%p381) target = $region68
        $region67: #{tpu_custom_call.1} parent=63 // pred_region
          %s384 = smul.u32 16, %s22
          %p385 = scmp.lt.s32.totalorder %s384, 31
          %s386 = scalar_select %p385, %s384, 31
          %s387 = smul.addr %s386, 4
          %s388 = scalar_lea.vmem %s0, %s387
          %s389 = smul.u32 16, %s22
        $region68: #{tpu_custom_call.1} parent=63 // pred_fallthru
          _
      $region64: #{tpu_custom_call.1} parent=5 // pred_fallthru
        _
      %p390 = scmp.le.s32.totalorder 1, %s22
      %p391 = scmp.lt.s32.totalorder %s22, 3
      %p392 = pnand %p390, %p391
      %p393 = pneg %p392
      // Predicated region
      $region69: #{tpu_custom_call.1} parent=5 // pred_check
        _
      $region70: #{tpu_custom_call.1} parent=5 // pred_check_branch
        %395 = sbr.rel (%p392) target = $region72
      $region71: #{tpu_custom_call.1} parent=5 // pred_region
        %s396 = ssub.s32 %s22, 1
        %s397 = smul.u32 16, %s27
        %p398 = scmp.lt.s32.totalorder %s397, 31
        %s399 = scalar_select %p398, %s397, 31
        %s400 = smul.addr %s399, 4
        %s401 = scalar_lea.vmem %s0, %s400
        %p402 = pneg %p48
        %p403 = pneg %p45
        %p404 = pneg %p69
        %p405 = pneg %p66
        %p406 = pneg %p90
        %p407 = pneg %p87
        %p408 = pneg %p111
        %p409 = pneg %p108
        %p410 = pneg %p132
        %p411 = pneg %p129
        %p412 = pneg %p153
        %p413 = pneg %p150
        %p414 = pneg %p174
        %p415 = pneg %p171
        %p416 = pneg %p195
        %p417 = pneg %p192
        %p418 = pneg %p216
        %p419 = pneg %p213
        %p420 = pneg %p237
        %p421 = pneg %p234
        %p422 = pneg %p258
        %p423 = pneg %p255
        %p424 = pneg %p279
        %p425 = pneg %p276
        %p426 = pneg %p300
        %p427 = pneg %p297
        %p428 = pneg %p326
        %p429 = pneg %p323
        %s430 = sand.u32 %s313, 1
        %s431 = scalar_lea.sflag [#allocation3], %s430
        %s432 = sand.u32 %s313, 1
        %s433 = smul.addr %s432, 128
        %s434 = scalar_lea.vmem [#allocation2], %s433
        %s435 = smul.u32 16, %s27
        %p436 = scmp.lt.s32.totalorder %s435, 31
        %s437 = scalar_select %p436, %s435, 31
        %s438 = smul.addr %s437, 4
        %s439 = scalar_lea.vmem %s0, %s438
        %s440 = smul.u32 16, %s27
        %s441 = smul.u32 16, %s27
        %v443 = vld [vmem:[%s439] sm:$0xf]
        %v444 = vld [vmem:[%s439 + $0x4] sm:$0xf]
        %v445 = vld [vmem:[%s439 + $0x8] sm:$0xf]
        %v446 = vld [vmem:[%s439 + $0xc] sm:$0xf]
        %v447 = vld [vmem:[%s439 + $0x10] sm:$0xf]
        %v448 = vld [vmem:[%s439 + $0x14] sm:$0xf]
        %v449 = vld [vmem:[%s439 + $0x18] sm:$0xf]
        %v450 = vld [vmem:[%s439 + $0x1c] sm:$0xf]
        %v451 = vld [vmem:[%s439 + $0x20] sm:$0xf]
        %v452 = vld [vmem:[%s439 + $0x24] sm:$0xf]
        %v453 = vld [vmem:[%s439 + $0x28] sm:$0xf]
        %v454 = vld [vmem:[%s439 + $0x2c] sm:$0xf]
        %v455 = vld [vmem:[%s439 + $0x30] sm:$0xf]
        %v456 = vld [vmem:[%s439 + $0x34] sm:$0xf]
        %v457 = vld [vmem:[%s439 + $0x38] sm:$0xf]
        %v458 = vld [vmem:[%s439 + $0x3c] sm:$0xf]
        %v459 = vld [vmem:[%s1] sm:$0xf]
        %v460 = vld [vmem:[%s1 + $0x4] sm:$0xf]
        %v461 = vld [vmem:[%s1 + $0x8] sm:$0x3]
        %v462 = vld [vmem:[%s2] sm:$0x1]
        %v464 = vperm.slane %v462, 0
        %v482 = vunpack.c.l.b16 %v443
        %v483 = vunpack.c.l.b16 %v444
        %v484 = vunpack.c.l.b16 %v445
        %v485 = vunpack.c.l.b16 %v446
        %v486 = vunpack.c.l.b16 %v447
        %v487 = vunpack.c.l.b16 %v448
        %v488 = vunpack.c.l.b16 %v449
        %v489 = vunpack.c.l.b16 %v450
        %v490 = vunpack.c.l.b16 %v451
        %v491 = vunpack.c.l.b16 %v452
        %v492 = vunpack.c.l.b16 %v453
        %v493 = vunpack.c.l.b16 %v454
        %v494 = vunpack.c.l.b16 %v455
        %v495 = vunpack.c.l.b16 %v456
        %v496 = vunpack.c.l.b16 %v457
        %v497 = vunpack.c.l.b16 %v458
        %v498 = vpack.c.b16 %v483, %v482
        %v499 = vpack.c.b16 %v485, %v484
        %v500 = vpack.c.b16 %v487, %v486
        %v501 = vpack.c.b16 %v489, %v488
        %v502 = vpack.c.b16 %v491, %v490
        %v503 = vpack.c.b16 %v493, %v492
        %v504 = vpack.c.b16 %v495, %v494
        %v505 = vpack.c.b16 %v497, %v496
        %v509 = vunpack.c.l.b16 %v459
        %v510 = vunpack.c.l.b16 %v460
        %v511 = vunpack.c.l.b16 %v461
        %v512 = vpack.c.b16 %v510, %v509
        %v513 = vpack.c.b16 %v511, %v511
        %vm515 = vcmask 162816
        %v517 = vsel %vm515, %v498, 0
        %v520 = vsel %vm515, %v499, 0
        %v523 = vsel %vm515, %v500, 0
        %v526 = vsel %vm515, %v501, 0
        %v529 = vsel %vm515, %v502, 0
        %v532 = vsel %vm515, %v503, 0
        %v535 = vsel %vm515, %v504, 0
        %v538 = vsel %vm515, %v505, 0
        %vm540 = vcmask 1041408
        %v542 = vsel %vm540, %v513, 0
        %544 = vmatpush.bf16.msra.mxu0 0
        %545 = vmatpush.bf16.msra.mxu0 0
        %546 = vmatpush.bf16.msra.mxu0 0
        %547 = vmatpush.bf16.msra.mxu0 0
        %548 = vmatpush.bf16.msra.mxu0 0
        %549 = vmatpush.bf16.msra.mxu0 0
        %550 = vmatpush.bf16.msra.mxu0 %v542
        %551 = vmatpush.bf16.msra.mxu0 %v512
        %552 = vmatmul.bf16.gmra.mxu0 %v517
        %v553 = vpop.f32.mrf.mxu0
        %v554 = vadd.f32 %v464, %v553
        %v555 = vpop.f32.mrf.mxu0
        %v556 = vadd.f32 %v464, %v555
        %557 = vmatmul.bf16.gmra.mxu0 %v520
        %v558 = vpop.f32.mrf.mxu0
        %v559 = vadd.f32 %v464, %v558
        %v560 = vpop.f32.mrf.mxu0
        %v561 = vadd.f32 %v464, %v560
        %562 = vmatmul.bf16.gmra.mxu0 %v523
        %v563 = vpop.f32.mrf.mxu0
        %v564 = vadd.f32 %v464, %v563
        %v565 = vpop.f32.mrf.mxu0
        %v566 = vadd.f32 %v464, %v565
        %567 = vmatmul.bf16.gmra.mxu0 %v526
        %v568 = vpop.f32.mrf.mxu0
        %v569 = vadd.f32 %v464, %v568
        %v570 = vpop.f32.mrf.mxu0
        %v571 = vadd.f32 %v464, %v570
        %572 = vmatmul.bf16.gmra.mxu0 %v529
        %v573 = vpop.f32.mrf.mxu0
        %v574 = vadd.f32 %v464, %v573
        %v575 = vpop.f32.mrf.mxu0
        %v576 = vadd.f32 %v464, %v575
        %577 = vmatmul.bf16.gmra.mxu0 %v532
        %v578 = vpop.f32.mrf.mxu0
        %v579 = vadd.f32 %v464, %v578
        %v580 = vpop.f32.mrf.mxu0
        %v581 = vadd.f32 %v464, %v580
        %582 = vmatmul.bf16.gmra.mxu0 %v535
        %v583 = vpop.f32.mrf.mxu0
        %v584 = vadd.f32 %v464, %v583
        %v585 = vpop.f32.mrf.mxu0
        %v586 = vadd.f32 %v464, %v585
        %587 = vmatmul.bf16.gmra.mxu0 %v538
        %v588 = vpop.f32.mrf.mxu0
        %v589 = vadd.f32 %v464, %v588
        %v590 = vpop.f32.mrf.mxu0
        %v591 = vadd.f32 %v464, %v590
        %592 = vdwg.mxu0
        %v593 = vld [vmem:[%s3] sm:$0x1]
        %v594 = vld [vmem:[%s4] sm:$0x1]
        %vm595 = vcmask 261120
        %v596 = vsel %vm595, %v554, 0.0
        %597 = vadd.xlane.f32.xlu0 %v596
        %v598 = vpop.xlane.xlu0 %597
        %v599 = vsel %vm595, %v556, 0.0
        %600 = vadd.xlane.f32.xlu0 %v599
        %v601 = vpop.xlane.xlu0 %600
        %v602 = vsel %vm595, %v559, 0.0
        %603 = vadd.xlane.f32.xlu0 %v602
        %v604 = vpop.xlane.xlu0 %603
        %v605 = vsel %vm595, %v561, 0.0
        %606 = vadd.xlane.f32.xlu0 %v605
        %v607 = vpop.xlane.xlu0 %606
        %v608 = vsel %vm595, %v564, 0.0
        %609 = vadd.xlane.f32.xlu0 %v608
        %v610 = vpop.xlane.xlu0 %609
        %v611 = vsel %vm595, %v566, 0.0
        %612 = vadd.xlane.f32.xlu0 %v611
        %v613 = vpop.xlane.xlu0 %612
        %v614 = vsel %vm595, %v569, 0.0
        %615 = vadd.xlane.f32.xlu0 %v614
        %v616 = vpop.xlane.xlu0 %615
        %v617 = vsel %vm595, %v571, 0.0
        %618 = vadd.xlane.f32.xlu0 %v617
        %v619 = vpop.xlane.xlu0 %618
        %v620 = vsel %vm595, %v574, 0.0
        %621 = vadd.xlane.f32.xlu0 %v620
        %v622 = vpop.xlane.xlu0 %621
        %v623 = vsel %vm595, %v576, 0.0
        %624 = vadd.xlane.f32.xlu0 %v623
        %v625 = vpop.xlane.xlu0 %624
        %v626 = vsel %vm595, %v579, 0.0
        %627 = vadd.xlane.f32.xlu0 %v626
        %v628 = vpop.xlane.xlu0 %627
        %v629 = vsel %vm595, %v581, 0.0
        %630 = vadd.xlane.f32.xlu0 %v629
        %v631 = vpop.xlane.xlu0 %630
        %v632 = vsel %vm595, %v584, 0.0
        %633 = vadd.xlane.f32.xlu0 %v632
        %v634 = vpop.xlane.xlu0 %633
        %v635 = vsel %vm595, %v586, 0.0
        %636 = vadd.xlane.f32.xlu0 %v635
        %v637 = vpop.xlane.xlu0 %636
        %v638 = vsel %vm595, %v589, 0.0
        %639 = vadd.xlane.f32.xlu0 %v638
        %v640 = vpop.xlane.xlu0 %639
        %v641 = vsel %vm595, %v591, 0.0
        %642 = vadd.xlane.f32.xlu0 %v641
        %v643 = vpop.xlane.xlu0 %642
        %v644 = vmul.f32 %v554, %v554
        %v645 = vmul.f32 %v556, %v556
        %v646 = vmul.f32 %v559, %v559
        %v647 = vmul.f32 %v561, %v561
        %v648 = vmul.f32 %v564, %v564
        %v649 = vmul.f32 %v566, %v566
        %v650 = vmul.f32 %v569, %v569
        %v651 = vmul.f32 %v571, %v571
        %v652 = vmul.f32 %v574, %v574
        %v653 = vmul.f32 %v576, %v576
        %v654 = vmul.f32 %v579, %v579
        %v655 = vmul.f32 %v581, %v581
        %v656 = vmul.f32 %v584, %v584
        %v657 = vmul.f32 %v586, %v586
        %v658 = vmul.f32 %v589, %v589
        %v659 = vmul.f32 %v591, %v591
        %v660 = vsel %vm595, %v644, 0.0
        %661 = vadd.xlane.f32.xlu0 %v660
        %v662 = vpop.xlane.xlu0 %661
        %v663 = vsel %vm595, %v645, 0.0
        %664 = vadd.xlane.f32.xlu0 %v663
        %v665 = vpop.xlane.xlu0 %664
        %v666 = vsel %vm595, %v646, 0.0
        %667 = vadd.xlane.f32.xlu0 %v666
        %v668 = vpop.xlane.xlu0 %667
        %v669 = vsel %vm595, %v647, 0.0
        %670 = vadd.xlane.f32.xlu0 %v669
        %v671 = vpop.xlane.xlu0 %670
        %v672 = vsel %vm595, %v648, 0.0
        %673 = vadd.xlane.f32.xlu0 %v672
        %v674 = vpop.xlane.xlu0 %673
        %v675 = vsel %vm595, %v649, 0.0
        %676 = vadd.xlane.f32.xlu0 %v675
        %v677 = vpop.xlane.xlu0 %676
        %v678 = vsel %vm595, %v650, 0.0
        %679 = vadd.xlane.f32.xlu0 %v678
        %v680 = vpop.xlane.xlu0 %679
        %v681 = vsel %vm595, %v651, 0.0
        %682 = vadd.xlane.f32.xlu0 %v681
        %v683 = vpop.xlane.xlu0 %682
        %v684 = vsel %vm595, %v652, 0.0
        %685 = vadd.xlane.f32.xlu0 %v684
        %v686 = vpop.xlane.xlu0 %685
        %v687 = vsel %vm595, %v653, 0.0
        %688 = vadd.xlane.f32.xlu0 %v687
        %v689 = vpop.xlane.xlu0 %688
        %v690 = vsel %vm595, %v654, 0.0
        %691 = vadd.xlane.f32.xlu0 %v690
        %v692 = vpop.xlane.xlu0 %691
        %v693 = vsel %vm595, %v655, 0.0
        %694 = vadd.xlane.f32.xlu0 %v693
        %v695 = vpop.xlane.xlu0 %694
        %v696 = vsel %vm595, %v656, 0.0
        %697 = vadd.xlane.f32.xlu0 %v696
        %v698 = vpop.xlane.xlu0 %697
        %v699 = vsel %vm595, %v657, 0.0
        %700 = vadd.xlane.f32.xlu0 %v699
        %v701 = vpop.xlane.xlu0 %700
        %v702 = vsel %vm595, %v658, 0.0
        %703 = vadd.xlane.f32.xlu0 %v702
        %v704 = vpop.xlane.xlu0 %703
        %v705 = vsel %vm595, %v659, 0.0
        %706 = vadd.xlane.f32.xlu0 %v705
        %v707 = vpop.xlane.xlu0 %706
        %v708 = vmul.f32 %v598, 0.03125
        %v709 = vmul.f32 %v601, 0.03125
        %v710 = vmul.f32 %v604, 0.03125
        %v711 = vmul.f32 %v607, 0.03125
        %v712 = vmul.f32 %v610, 0.03125
        %v713 = vmul.f32 %v613, 0.03125
        %v714 = vmul.f32 %v616, 0.03125
        %v715 = vmul.f32 %v619, 0.03125
        %v716 = vmul.f32 %v622, 0.03125
        %v717 = vmul.f32 %v625, 0.03125
        %v718 = vmul.f32 %v628, 0.03125
        %v719 = vmul.f32 %v631, 0.03125
        %v720 = vmul.f32 %v634, 0.03125
        %v721 = vmul.f32 %v637, 0.03125
        %v722 = vmul.f32 %v640, 0.03125
        %v723 = vmul.f32 %v643, 0.03125
        %v724 = vmul.f32 %v662, 0.03125
        %v725 = vmul.f32 %v665, 0.03125
        %v726 = vmul.f32 %v668, 0.03125
        %v727 = vmul.f32 %v671, 0.03125
        %v728 = vmul.f32 %v674, 0.03125
        %v729 = vmul.f32 %v677, 0.03125
        %v730 = vmul.f32 %v680, 0.03125
        %v731 = vmul.f32 %v683, 0.03125
        %v732 = vmul.f32 %v686, 0.03125
        %v733 = vmul.f32 %v689, 0.03125
        %v734 = vmul.f32 %v692, 0.03125
        %v735 = vmul.f32 %v695, 0.03125
        %v736 = vmul.f32 %v698, 0.03125
        %v737 = vmul.f32 %v701, 0.03125
        %v738 = vmul.f32 %v704, 0.03125
        %v739 = vmul.f32 %v707, 0.03125
        %v740 = vmul.f32 %v708, %v708
        %v741 = vmul.f32 %v709, %v709
        %v742 = vmul.f32 %v710, %v710
        %v743 = vmul.f32 %v711, %v711
        %v744 = vmul.f32 %v712, %v712
        %v745 = vmul.f32 %v713, %v713
        %v746 = vmul.f32 %v714, %v714
        %v747 = vmul.f32 %v715, %v715
        %v748 = vmul.f32 %v716, %v716
        %v749 = vmul.f32 %v717, %v717
        %v750 = vmul.f32 %v718, %v718
        %v751 = vmul.f32 %v719, %v719
        %v752 = vmul.f32 %v720, %v720
        %v753 = vmul.f32 %v721, %v721
        %v754 = vmul.f32 %v722, %v722
        %v755 = vmul.f32 %v723, %v723
        %v756 = vsub.f32 %v724, %v740
        %v757 = vsub.f32 %v725, %v741
        %v758 = vsub.f32 %v726, %v742
        %v759 = vsub.f32 %v727, %v743
        %v760 = vsub.f32 %v728, %v744
        %v761 = vsub.f32 %v729, %v745
        %v762 = vsub.f32 %v730, %v746
        %v763 = vsub.f32 %v731, %v747
        %v764 = vsub.f32 %v732, %v748
        %v765 = vsub.f32 %v733, %v749
        %v766 = vsub.f32 %v734, %v750
        %v767 = vsub.f32 %v735, %v751
        %v768 = vsub.f32 %v736, %v752
        %v769 = vsub.f32 %v737, %v753
        %v770 = vsub.f32 %v738, %v754
        %v771 = vsub.f32 %v739, %v755
        %v772 = vadd.f32 %v756, 1e-05
        %v773 = vadd.f32 %v757, 1e-05
        %v774 = vadd.f32 %v758, 1e-05
        %v775 = vadd.f32 %v759, 1e-05
        %v776 = vadd.f32 %v760, 1e-05
        %v777 = vadd.f32 %v761, 1e-05
        %v778 = vadd.f32 %v762, 1e-05
        %v779 = vadd.f32 %v763, 1e-05
        %v780 = vadd.f32 %v764, 1e-05
        %v781 = vadd.f32 %v765, 1e-05
        %v782 = vadd.f32 %v766, 1e-05
        %v783 = vadd.f32 %v767, 1e-05
        %v784 = vadd.f32 %v768, 1e-05
        %v785 = vadd.f32 %v769, 1e-05
        %v786 = vadd.f32 %v770, 1e-05
        %v787 = vadd.f32 %v771, 1e-05
        %v788 = vrsqrt.pop %v772
        %v789 = vmul.f32 %v788, %v772
        %v790 = vmul.f32 %v789, %v788
        %v791 = vmul.f32 0.5, %v790
        %v792 = vsub.f32 1.5, %v791
        %v793 = vmul.f32 %v788, %v792
        %vm794 = vweird.f32 %v772
        %vm795 = vweird.f32 %v788
        %vm796 = vmor %vm794, %vm795
        %v797 = vsel %vm796, %v788, %v793
        %v798 = vrsqrt.pop %v773
        %v799 = vmul.f32 %v798, %v773
        %v800 = vmul.f32 %v799, %v798
        %v801 = vmul.f32 0.5, %v800
        %v802 = vsub.f32 1.5, %v801
        %v803 = vmul.f32 %v798, %v802
        %vm804 = vweird.f32 %v773
        %vm805 = vweird.f32 %v798
        %vm806 = vmor %vm804, %vm805
        %v807 = vsel %vm806, %v798, %v803
        %v808 = vrsqrt.pop %v774
        %v809 = vmul.f32 %v808, %v774
        %v810 = vmul.f32 %v809, %v808
        %v811 = vmul.f32 0.5, %v810
        %v812 = vsub.f32 1.5, %v811
        %v813 = vmul.f32 %v808, %v812
        %vm814 = vweird.f32 %v774
        %vm815 = vweird.f32 %v808
        %vm816 = vmor %vm814, %vm815
        %v817 = vsel %vm816, %v808, %v813
        %v818 = vrsqrt.pop %v775
        %v819 = vmul.f32 %v818, %v775
        %v820 = vmul.f32 %v819, %v818
        %v821 = vmul.f32 0.5, %v820
        %v822 = vsub.f32 1.5, %v821
        %v823 = vmul.f32 %v818, %v822
        %vm824 = vweird.f32 %v775
        %vm825 = vweird.f32 %v818
        %vm826 = vmor %vm824, %vm825
        %v827 = vsel %vm826, %v818, %v823
        %v828 = vrsqrt.pop %v776
        %v829 = vmul.f32 %v828, %v776
        %v830 = vmul.f32 %v829, %v828
        %v831 = vmul.f32 0.5, %v830
        %v832 = vsub.f32 1.5, %v831
        %v833 = vmul.f32 %v828, %v832
        %vm834 = vweird.f32 %v776
        %vm835 = vweird.f32 %v828
        %vm836 = vmor %vm834, %vm835
        %v837 = vsel %vm836, %v828, %v833
        %v838 = vrsqrt.pop %v777
        %v839 = vmul.f32 %v838, %v777
        %v840 = vmul.f32 %v839, %v838
        %v841 = vmul.f32 0.5, %v840
        %v842 = vsub.f32 1.5, %v841
        %v843 = vmul.f32 %v838, %v842
        %vm844 = vweird.f32 %v777
        %vm845 = vweird.f32 %v838
        %vm846 = vmor %vm844, %vm845
        %v847 = vsel %vm846, %v838, %v843
        %v848 = vrsqrt.pop %v778
        %v849 = vmul.f32 %v848, %v778
        %v850 = vmul.f32 %v849, %v848
        %v851 = vmul.f32 0.5, %v850
        %v852 = vsub.f32 1.5, %v851
        %v853 = vmul.f32 %v848, %v852
        %vm854 = vweird.f32 %v778
        %vm855 = vweird.f32 %v848
        %vm856 = vmor %vm854, %vm855
        %v857 = vsel %vm856, %v848, %v853
        %v858 = vrsqrt.pop %v779
        %v859 = vmul.f32 %v858, %v779
        %v860 = vmul.f32 %v859, %v858
        %v861 = vmul.f32 0.5, %v860
        %v862 = vsub.f32 1.5, %v861
        %v863 = vmul.f32 %v858, %v862
        %vm864 = vweird.f32 %v779
        %vm865 = vweird.f32 %v858
        %vm866 = vmor %vm864, %vm865
        %v867 = vsel %vm866, %v858, %v863
        %v868 = vrsqrt.pop %v780
        %v869 = vmul.f32 %v868, %v780
        %v870 = vmul.f32 %v869, %v868
        %v871 = vmul.f32 0.5, %v870
        %v872 = vsub.f32 1.5, %v871
        %v873 = vmul.f32 %v868, %v872
        %vm874 = vweird.f32 %v780
        %vm875 = vweird.f32 %v868
        %vm876 = vmor %vm874, %vm875
        %v877 = vsel %vm876, %v868, %v873
        %v878 = vrsqrt.pop %v781
        %v879 = vmul.f32 %v878, %v781
        %v880 = vmul.f32 %v879, %v878
        %v881 = vmul.f32 0.5, %v880
        %v882 = vsub.f32 1.5, %v881
        %v883 = vmul.f32 %v878, %v882
        %vm884 = vweird.f32 %v781
        %vm885 = vweird.f32 %v878
        %vm886 = vmor %vm884, %vm885
        %v887 = vsel %vm886, %v878, %v883
        %v888 = vrsqrt.pop %v782
        %v889 = vmul.f32 %v888, %v782
        %v890 = vmul.f32 %v889, %v888
        %v891 = vmul.f32 0.5, %v890
        %v892 = vsub.f32 1.5, %v891
        %v893 = vmul.f32 %v888, %v892
        %vm894 = vweird.f32 %v782
        %vm895 = vweird.f32 %v888
        %vm896 = vmor %vm894, %vm895
        %v897 = vsel %vm896, %v888, %v893
        %v898 = vrsqrt.pop %v783
        %v899 = vmul.f32 %v898, %v783
        %v900 = vmul.f32 %v899, %v898
        %v901 = vmul.f32 0.5, %v900
        %v902 = vsub.f32 1.5, %v901
        %v903 = vmul.f32 %v898, %v902
        %vm904 = vweird.f32 %v783
        %vm905 = vweird.f32 %v898
        %vm906 = vmor %vm904, %vm905
        %v907 = vsel %vm906, %v898, %v903
        %v908 = vrsqrt.pop %v784
        %v909 = vmul.f32 %v908, %v784
        %v910 = vmul.f32 %v909, %v908
        %v911 = vmul.f32 0.5, %v910
        %v912 = vsub.f32 1.5, %v911
        %v913 = vmul.f32 %v908, %v912
        %vm914 = vweird.f32 %v784
        %vm915 = vweird.f32 %v908
        %vm916 = vmor %vm914, %vm915
        %v917 = vsel %vm916, %v908, %v913
        %v918 = vrsqrt.pop %v785
        %v919 = vmul.f32 %v918, %v785
        %v920 = vmul.f32 %v919, %v918
        %v921 = vmul.f32 0.5, %v920
        %v922 = vsub.f32 1.5, %v921
        %v923 = vmul.f32 %v918, %v922
        %vm924 = vweird.f32 %v785
        %vm925 = vweird.f32 %v918
        %vm926 = vmor %vm924, %vm925
        %v927 = vsel %vm926, %v918, %v923
        %v928 = vrsqrt.pop %v786
        %v929 = vmul.f32 %v928, %v786
        %v930 = vmul.f32 %v929, %v928
        %v931 = vmul.f32 0.5, %v930
        %v932 = vsub.f32 1.5, %v931
        %v933 = vmul.f32 %v928, %v932
        %vm934 = vweird.f32 %v786
        %vm935 = vweird.f32 %v928
        %vm936 = vmor %vm934, %vm935
        %v937 = vsel %vm936, %v928, %v933
        %v938 = vrsqrt.pop %v787
        %v939 = vmul.f32 %v938, %v787
        %v940 = vmul.f32 %v939, %v938
        %v941 = vmul.f32 0.5, %v940
        %v942 = vsub.f32 1.5, %v941
        %v943 = vmul.f32 %v938, %v942
        %vm944 = vweird.f32 %v787
        %vm945 = vweird.f32 %v938
        %vm946 = vmor %vm944, %vm945
        %v947 = vsel %vm946, %v938, %v943
        %v948 = vsub.f32 %v554, %v708
        %v949 = vsub.f32 %v556, %v709
        %v950 = vsub.f32 %v559, %v710
        %v951 = vsub.f32 %v561, %v711
        %v952 = vsub.f32 %v564, %v712
        %v953 = vsub.f32 %v566, %v713
        %v954 = vsub.f32 %v569, %v714
        %v955 = vsub.f32 %v571, %v715
        %v956 = vsub.f32 %v574, %v716
        %v957 = vsub.f32 %v576, %v717
        %v958 = vsub.f32 %v579, %v718
        %v959 = vsub.f32 %v581, %v719
        %v960 = vsub.f32 %v584, %v720
        %v961 = vsub.f32 %v586, %v721
        %v962 = vsub.f32 %v589, %v722
        %v963 = vsub.f32 %v591, %v723
        %v964 = vmul.f32 %v948, %v797
        %v965 = vmul.f32 %v949, %v807
        %v966 = vmul.f32 %v950, %v817
        %v967 = vmul.f32 %v951, %v827
        %v968 = vmul.f32 %v952, %v837
        %v969 = vmul.f32 %v953, %v847
        %v970 = vmul.f32 %v954, %v857
        %v971 = vmul.f32 %v955, %v867
        %v972 = vmul.f32 %v956, %v877
        %v973 = vmul.f32 %v957, %v887
        %v974 = vmul.f32 %v958, %v897
        %v975 = vmul.f32 %v959, %v907
        %v976 = vmul.f32 %v960, %v917
        %v977 = vmul.f32 %v961, %v927
        %v978 = vmul.f32 %v962, %v937
        %v979 = vmul.f32 %v963, %v947
        %v980 = vperm.slane %v593, 0
        %v981 = vmul.f32 %v964, %v980
        %v982 = vmul.f32 %v965, %v980
        %v983 = vmul.f32 %v966, %v980
        %v984 = vmul.f32 %v967, %v980
        %v985 = vmul.f32 %v968, %v980
        %v986 = vmul.f32 %v969, %v980
        %v987 = vmul.f32 %v970, %v980
        %v988 = vmul.f32 %v971, %v980
        %v989 = vmul.f32 %v972, %v980
        %v990 = vmul.f32 %v973, %v980
        %v991 = vmul.f32 %v974, %v980
        %v992 = vmul.f32 %v975, %v980
        %v993 = vmul.f32 %v976, %v980
        %v994 = vmul.f32 %v977, %v980
        %v995 = vmul.f32 %v978, %v980
        %v996 = vmul.f32 %v979, %v980
        %v997 = vperm.slane %v594, 0
        %v998 = vadd.f32 %v981, %v997
        %v999 = vadd.f32 %v982, %v997
        %v1000 = vadd.f32 %v983, %v997
        %v1001 = vadd.f32 %v984, %v997
        %v1002 = vadd.f32 %v985, %v997
        %v1003 = vadd.f32 %v986, %v997
        %v1004 = vadd.f32 %v987, %v997
        %v1005 = vadd.f32 %v988, %v997
        %v1006 = vadd.f32 %v989, %v997
        %v1007 = vadd.f32 %v990, %v997
        %v1008 = vadd.f32 %v991, %v997
        %v1009 = vadd.f32 %v992, %v997
        %v1010 = vadd.f32 %v993, %v997
        %v1011 = vadd.f32 %v994, %v997
        %v1012 = vadd.f32 %v995, %v997
        %v1013 = vadd.f32 %v996, %v997
        %v1014 = vpack.c.bf16 %v999, %v998
        %v1015 = vpack.c.bf16 %v1001, %v1000
        %v1016 = vpack.c.bf16 %v1003, %v1002
        %v1017 = vpack.c.bf16 %v1005, %v1004
        %v1018 = vpack.c.bf16 %v1007, %v1006
        %v1019 = vpack.c.bf16 %v1009, %v1008
        %v1020 = vpack.c.bf16 %v1011, %v1010
        %v1021 = vpack.c.bf16 %v1013, %v1012
        %v1022 = vld [vmem:[%s5] sm:$0xf]
        %v1023 = vld [vmem:[%s5 + $0x4] sm:$0xf]
        %v1024 = vld [vmem:[%s5 + $0x8] sm:$0xf]
        %v1025 = vld [vmem:[%s5 + $0xc] sm:$0xf]
        %v1026 = vld [vmem:[%s6] sm:$0x1]
        %v1027 = vperm.slane %v1026, 0
        %v1032 = vunpack.c.l.b16 %v1022
        %v1033 = vunpack.c.l.b16 %v1023
        %v1034 = vunpack.c.l.b16 %v1024
        %v1035 = vunpack.c.l.b16 %v1025
        %v1036 = vpack.c.b16 %v1033, %v1032
        %v1037 = vpack.c.b16 %v1035, %v1034
        %v1041 = vsel %vm595, %v1014, 0
        %v1044 = vsel %vm595, %v1015, 0
        %v1047 = vsel %vm595, %v1016, 0
        %v1050 = vsel %vm595, %v1017, 0
        %v1053 = vsel %vm595, %v1018, 0
        %v1056 = vsel %vm595, %v1019, 0
        %v1059 = vsel %vm595, %v1020, 0
        %v1062 = vsel %vm595, %v1021, 0
        %1064 = vmatpush.bf16.msra.mxu0 0
        %1065 = vmatpush.bf16.msra.mxu0 0
        %1066 = vmatpush.bf16.msra.mxu0 0
        %1067 = vmatpush.bf16.msra.mxu0 0
        %1068 = vmatpush.bf16.msra.mxu0 0
        %1069 = vmatpush.bf16.msra.mxu0 0
        %1070 = vmatpush.bf16.msra.mxu0 %v1037
        %1071 = vmatpush.bf16.msra.mxu0 %v1036
        %1072 = vmatmul.bf16.gmra.mxu0 %v1041
        %v1073 = vpop.f32.mrf.mxu0
        %v1074 = vadd.f32 %v1027, %v1073
        %v1075 = vpop.f32.mrf.mxu0
        %v1076 = vadd.f32 %v1027, %v1075
        %1077 = vmatmul.bf16.gmra.mxu0 %v1044
        %v1078 = vpop.f32.mrf.mxu0
        %v1079 = vadd.f32 %v1027, %v1078
        %v1080 = vpop.f32.mrf.mxu0
        %v1081 = vadd.f32 %v1027, %v1080
        %1082 = vmatmul.bf16.gmra.mxu0 %v1047
        %v1083 = vpop.f32.mrf.mxu0
        %v1084 = vadd.f32 %v1027, %v1083
        %v1085 = vpop.f32.mrf.mxu0
        %v1086 = vadd.f32 %v1027, %v1085
        %1087 = vmatmul.bf16.gmra.mxu0 %v1050
        %v1088 = vpop.f32.mrf.mxu0
        %v1089 = vadd.f32 %v1027, %v1088
        %v1090 = vpop.f32.mrf.mxu0
        %v1091 = vadd.f32 %v1027, %v1090
        %1092 = vmatmul.bf16.gmra.mxu0 %v1053
        %v1093 = vpop.f32.mrf.mxu0
        %v1094 = vadd.f32 %v1027, %v1093
        %v1095 = vpop.f32.mrf.mxu0
        %v1096 = vadd.f32 %v1027, %v1095
        %1097 = vmatmul.bf16.gmra.mxu0 %v1056
        %v1098 = vpop.f32.mrf.mxu0
        %v1099 = vadd.f32 %v1027, %v1098
        %v1100 = vpop.f32.mrf.mxu0
        %v1101 = vadd.f32 %v1027, %v1100
        %1102 = vmatmul.bf16.gmra.mxu0 %v1059
        %v1103 = vpop.f32.mrf.mxu0
        %v1104 = vadd.f32 %v1027, %v1103
        %v1105 = vpop.f32.mrf.mxu0
        %v1106 = vadd.f32 %v1027, %v1105
        %1107 = vmatmul.bf16.gmra.mxu0 %v1062
        %v1108 = vpop.f32.mrf.mxu0
        %v1109 = vadd.f32 %v1027, %v1108
        %v1110 = vpop.f32.mrf.mxu0
        %v1111 = vadd.f32 %v1027, %v1110
        %1112 = vdwg.mxu0
        %v1113 = vmax.f32 %v1074, 0.0
        %v1114 = vmax.f32 %v1076, 0.0
        %v1115 = vmax.f32 %v1079, 0.0
        %v1116 = vmax.f32 %v1081, 0.0
        %v1117 = vmax.f32 %v1084, 0.0
        %v1118 = vmax.f32 %v1086, 0.0
        %v1119 = vmax.f32 %v1089, 0.0
        %v1120 = vmax.f32 %v1091, 0.0
        %v1121 = vmax.f32 %v1094, 0.0
        %v1122 = vmax.f32 %v1096, 0.0
        %v1123 = vmax.f32 %v1099, 0.0
        %v1124 = vmax.f32 %v1101, 0.0
        %v1125 = vmax.f32 %v1104, 0.0
        %v1126 = vmax.f32 %v1106, 0.0
        %v1127 = vmax.f32 %v1109, 0.0
        %v1128 = vmax.f32 %v1111, 0.0
        %v1129 = vpack.c.bf16 %v1114, %v1113
        %v1130 = vpack.c.bf16 %v1116, %v1115
        %v1131 = vpack.c.bf16 %v1118, %v1117
        %v1132 = vpack.c.bf16 %v1120, %v1119
        %v1133 = vpack.c.bf16 %v1122, %v1121
        %v1134 = vpack.c.bf16 %v1124, %v1123
        %v1135 = vpack.c.bf16 %v1126, %v1125
        %v1136 = vpack.c.bf16 %v1128, %v1127
        %v1137 = vld [vmem:[%s7] sm:$0xf]
        %v1138 = vld [vmem:[%s7 + $0x4] sm:$0xf]
        %v1139 = vld [vmem:[%s7 + $0x8] sm:$0xf]
        %v1140 = vld [vmem:[%s7 + $0xc] sm:$0xf]
        %v1141 = vld [vmem:[%s7 + $0x10] sm:$0xf]
        %v1142 = vld [vmem:[%s7 + $0x14] sm:$0xf]
        %v1143 = vld [vmem:[%s7 + $0x18] sm:$0xf]
        %v1144 = vld [vmem:[%s7 + $0x1c] sm:$0xf]
        %v1145 = vld [vmem:[%s8] sm:$0x1]
        %v1146 = vperm.slane %v1145, 0
        %v1155 = vunpack.c.l.b16 %v1137
        %v1156 = vunpack.c.l.b16 %v1138
        %v1157 = vunpack.c.l.b16 %v1139
        %v1158 = vunpack.c.l.b16 %v1140
        %v1159 = vunpack.c.l.b16 %v1141
        %v1160 = vunpack.c.l.b16 %v1142
        %v1161 = vunpack.c.l.b16 %v1143
        %v1162 = vunpack.c.l.b16 %v1144
        %v1163 = vpack.c.b16 %v1156, %v1155
        %v1164 = vpack.c.b16 %v1158, %v1157
        %v1165 = vpack.c.b16 %v1160, %v1159
        %v1166 = vpack.c.b16 %v1162, %v1161
        %vm1171 = vcmask 523264
        %v1173 = vsel %vm1171, %v1129, 0
        %v1176 = vsel %vm1171, %v1130, 0
        %v1179 = vsel %vm1171, %v1131, 0
        %v1182 = vsel %vm1171, %v1132, 0
        %v1185 = vsel %vm1171, %v1133, 0
        %v1188 = vsel %vm1171, %v1134, 0
        %v1191 = vsel %vm1171, %v1135, 0
        %v1194 = vsel %vm1171, %v1136, 0
        %1196 = vmatpush.bf16.msra.mxu0 0
        %1197 = vmatpush.bf16.msra.mxu0 0
        %1198 = vmatpush.bf16.msra.mxu0 0
        %1199 = vmatpush.bf16.msra.mxu0 0
        %1200 = vmatpush.bf16.msra.mxu0 %v1166
        %1201 = vmatpush.bf16.msra.mxu0 %v1165
        %1202 = vmatpush.bf16.msra.mxu0 %v1164
        %1203 = vmatpush.bf16.msra.mxu0 %v1163
        %1204 = vmatmul.bf16.gmra.mxu0 %v1173
        %v1205 = vpop.f32.mrf.mxu0
        %v1206 = vadd.f32 %v1146, %v1205
        %v1207 = vpop.f32.mrf.mxu0
        %v1208 = vadd.f32 %v1146, %v1207
        %1209 = vmatmul.bf16.gmra.mxu0 %v1176
        %v1210 = vpop.f32.mrf.mxu0
        %v1211 = vadd.f32 %v1146, %v1210
        %v1212 = vpop.f32.mrf.mxu0
        %v1213 = vadd.f32 %v1146, %v1212
        %1214 = vmatmul.bf16.gmra.mxu0 %v1179
        %v1215 = vpop.f32.mrf.mxu0
        %v1216 = vadd.f32 %v1146, %v1215
        %v1217 = vpop.f32.mrf.mxu0
        %v1218 = vadd.f32 %v1146, %v1217
        %1219 = vmatmul.bf16.gmra.mxu0 %v1182
        %v1220 = vpop.f32.mrf.mxu0
        %v1221 = vadd.f32 %v1146, %v1220
        %v1222 = vpop.f32.mrf.mxu0
        %v1223 = vadd.f32 %v1146, %v1222
        %1224 = vmatmul.bf16.gmra.mxu0 %v1185
        %v1225 = vpop.f32.mrf.mxu0
        %v1226 = vadd.f32 %v1146, %v1225
        %v1227 = vpop.f32.mrf.mxu0
        %v1228 = vadd.f32 %v1146, %v1227
        %1229 = vmatmul.bf16.gmra.mxu0 %v1188
        %v1230 = vpop.f32.mrf.mxu0
        %v1231 = vadd.f32 %v1146, %v1230
        %v1232 = vpop.f32.mrf.mxu0
        %v1233 = vadd.f32 %v1146, %v1232
        %1234 = vmatmul.bf16.gmra.mxu0 %v1191
        %v1235 = vpop.f32.mrf.mxu0
        %v1236 = vadd.f32 %v1146, %v1235
        %v1237 = vpop.f32.mrf.mxu0
        %v1238 = vadd.f32 %v1146, %v1237
        %1239 = vmatmul.bf16.gmra.mxu0 %v1194
        %v1240 = vpop.f32.mrf.mxu0
        %v1241 = vadd.f32 %v1146, %v1240
        %v1242 = vpop.f32.mrf.mxu0
        %v1243 = vadd.f32 %v1146, %v1242
        %1244 = vdwg.mxu0
        %v1245 = vadd.f32 %v554, %v1206
        %v1246 = vadd.f32 %v556, %v1208
        %v1247 = vadd.f32 %v559, %v1211
        %v1248 = vadd.f32 %v561, %v1213
        %v1249 = vadd.f32 %v564, %v1216
        %v1250 = vadd.f32 %v566, %v1218
        %v1251 = vadd.f32 %v569, %v1221
        %v1252 = vadd.f32 %v571, %v1223
        %v1253 = vadd.f32 %v574, %v1226
        %v1254 = vadd.f32 %v576, %v1228
        %v1255 = vadd.f32 %v579, %v1231
        %v1256 = vadd.f32 %v581, %v1233
        %v1257 = vadd.f32 %v584, %v1236
        %v1258 = vadd.f32 %v586, %v1238
        %v1259 = vadd.f32 %v589, %v1241
        %v1260 = vadd.f32 %v591, %v1243
        %v1261 = vld [vmem:[%s3 + $0x1] sm:$0x1]
        %v1262 = vld [vmem:[%s4 + $0x1] sm:$0x1]
        %v1263 = vsel %vm595, %v1245, 0.0
        %1264 = vadd.xlane.f32.xlu0 %v1263
        %v1265 = vpop.xlane.xlu0 %1264
        %v1266 = vsel %vm595, %v1246, 0.0
        %1267 = vadd.xlane.f32.xlu0 %v1266
        %v1268 = vpop.xlane.xlu0 %1267
        %v1269 = vsel %vm595, %v1247, 0.0
        %1270 = vadd.xlane.f32.xlu0 %v1269
        %v1271 = vpop.xlane.xlu0 %1270
        %v1272 = vsel %vm595, %v1248, 0.0
        %1273 = vadd.xlane.f32.xlu0 %v1272
        %v1274 = vpop.xlane.xlu0 %1273
        %v1275 = vsel %vm595, %v1249, 0.0
        %1276 = vadd.xlane.f32.xlu0 %v1275
        %v1277 = vpop.xlane.xlu0 %1276
        %v1278 = vsel %vm595, %v1250, 0.0
        %1279 = vadd.xlane.f32.xlu0 %v1278
        %v1280 = vpop.xlane.xlu0 %1279
        %v1281 = vsel %vm595, %v1251, 0.0
        %1282 = vadd.xlane.f32.xlu0 %v1281
        %v1283 = vpop.xlane.xlu0 %1282
        %v1284 = vsel %vm595, %v1252, 0.0
        %1285 = vadd.xlane.f32.xlu0 %v1284
        %v1286 = vpop.xlane.xlu0 %1285
        %v1287 = vsel %vm595, %v1253, 0.0
        %1288 = vadd.xlane.f32.xlu0 %v1287
        %v1289 = vpop.xlane.xlu0 %1288
        %v1290 = vsel %vm595, %v1254, 0.0
        %1291 = vadd.xlane.f32.xlu0 %v1290
        %v1292 = vpop.xlane.xlu0 %1291
        %v1293 = vsel %vm595, %v1255, 0.0
        %1294 = vadd.xlane.f32.xlu0 %v1293
        %v1295 = vpop.xlane.xlu0 %1294
        %v1296 = vsel %vm595, %v1256, 0.0
        %1297 = vadd.xlane.f32.xlu0 %v1296
        %v1298 = vpop.xlane.xlu0 %1297
        %v1299 = vsel %vm595, %v1257, 0.0
        %1300 = vadd.xlane.f32.xlu0 %v1299
        %v1301 = vpop.xlane.xlu0 %1300
        %v1302 = vsel %vm595, %v1258, 0.0
        %1303 = vadd.xlane.f32.xlu0 %v1302
        %v1304 = vpop.xlane.xlu0 %1303
        %v1305 = vsel %vm595, %v1259, 0.0
        %1306 = vadd.xlane.f32.xlu0 %v1305
        %v1307 = vpop.xlane.xlu0 %1306
        %v1308 = vsel %vm595, %v1260, 0.0
        %1309 = vadd.xlane.f32.xlu0 %v1308
        %v1310 = vpop.xlane.xlu0 %1309
        %v1311 = vmul.f32 %v1245, %v1245
        %v1312 = vmul.f32 %v1246, %v1246
        %v1313 = vmul.f32 %v1247, %v1247
        %v1314 = vmul.f32 %v1248, %v1248
        %v1315 = vmul.f32 %v1249, %v1249
        %v1316 = vmul.f32 %v1250, %v1250
        %v1317 = vmul.f32 %v1251, %v1251
        %v1318 = vmul.f32 %v1252, %v1252
        %v1319 = vmul.f32 %v1253, %v1253
        %v1320 = vmul.f32 %v1254, %v1254
        %v1321 = vmul.f32 %v1255, %v1255
        %v1322 = vmul.f32 %v1256, %v1256
        %v1323 = vmul.f32 %v1257, %v1257
        %v1324 = vmul.f32 %v1258, %v1258
        %v1325 = vmul.f32 %v1259, %v1259
        %v1326 = vmul.f32 %v1260, %v1260
        %v1327 = vsel %vm595, %v1311, 0.0
        %1328 = vadd.xlane.f32.xlu0 %v1327
        %v1329 = vpop.xlane.xlu0 %1328
        %v1330 = vsel %vm595, %v1312, 0.0
        %1331 = vadd.xlane.f32.xlu0 %v1330
        %v1332 = vpop.xlane.xlu0 %1331
        %v1333 = vsel %vm595, %v1313, 0.0
        %1334 = vadd.xlane.f32.xlu0 %v1333
        %v1335 = vpop.xlane.xlu0 %1334
        %v1336 = vsel %vm595, %v1314, 0.0
        %1337 = vadd.xlane.f32.xlu0 %v1336
        %v1338 = vpop.xlane.xlu0 %1337
        %v1339 = vsel %vm595, %v1315, 0.0
        %1340 = vadd.xlane.f32.xlu0 %v1339
        %v1341 = vpop.xlane.xlu0 %1340
        %v1342 = vsel %vm595, %v1316, 0.0
        %1343 = vadd.xlane.f32.xlu0 %v1342
        %v1344 = vpop.xlane.xlu0 %1343
        %v1345 = vsel %vm595, %v1317, 0.0
        %1346 = vadd.xlane.f32.xlu0 %v1345
        %v1347 = vpop.xlane.xlu0 %1346
        %v1348 = vsel %vm595, %v1318, 0.0
        %1349 = vadd.xlane.f32.xlu0 %v1348
        %v1350 = vpop.xlane.xlu0 %1349
        %v1351 = vsel %vm595, %v1319, 0.0
        %1352 = vadd.xlane.f32.xlu0 %v1351
        %v1353 = vpop.xlane.xlu0 %1352
        %v1354 = vsel %vm595, %v1320, 0.0
        %1355 = vadd.xlane.f32.xlu0 %v1354
        %v1356 = vpop.xlane.xlu0 %1355
        %v1357 = vsel %vm595, %v1321, 0.0
        %1358 = vadd.xlane.f32.xlu0 %v1357
        %v1359 = vpop.xlane.xlu0 %1358
        %v1360 = vsel %vm595, %v1322, 0.0
        %1361 = vadd.xlane.f32.xlu0 %v1360
        %v1362 = vpop.xlane.xlu0 %1361
        %v1363 = vsel %vm595, %v1323, 0.0
        %1364 = vadd.xlane.f32.xlu0 %v1363
        %v1365 = vpop.xlane.xlu0 %1364
        %v1366 = vsel %vm595, %v1324, 0.0
        %1367 = vadd.xlane.f32.xlu0 %v1366
        %v1368 = vpop.xlane.xlu0 %1367
        %v1369 = vsel %vm595, %v1325, 0.0
        %1370 = vadd.xlane.f32.xlu0 %v1369
        %v1371 = vpop.xlane.xlu0 %1370
        %v1372 = vsel %vm595, %v1326, 0.0
        %1373 = vadd.xlane.f32.xlu0 %v1372
        %v1374 = vpop.xlane.xlu0 %1373
        %v1375 = vmul.f32 %v1265, 0.03125
        %v1376 = vmul.f32 %v1268, 0.03125
        %v1377 = vmul.f32 %v1271, 0.03125
        %v1378 = vmul.f32 %v1274, 0.03125
        %v1379 = vmul.f32 %v1277, 0.03125
        %v1380 = vmul.f32 %v1280, 0.03125
        %v1381 = vmul.f32 %v1283, 0.03125
        %v1382 = vmul.f32 %v1286, 0.03125
        %v1383 = vmul.f32 %v1289, 0.03125
        %v1384 = vmul.f32 %v1292, 0.03125
        %v1385 = vmul.f32 %v1295, 0.03125
        %v1386 = vmul.f32 %v1298, 0.03125
        %v1387 = vmul.f32 %v1301, 0.03125
        %v1388 = vmul.f32 %v1304, 0.03125
        %v1389 = vmul.f32 %v1307, 0.03125
        %v1390 = vmul.f32 %v1310, 0.03125
        %v1391 = vmul.f32 %v1329, 0.03125
        %v1392 = vmul.f32 %v1332, 0.03125
        %v1393 = vmul.f32 %v1335, 0.03125
        %v1394 = vmul.f32 %v1338, 0.03125
        %v1395 = vmul.f32 %v1341, 0.03125
        %v1396 = vmul.f32 %v1344, 0.03125
        %v1397 = vmul.f32 %v1347, 0.03125
        %v1398 = vmul.f32 %v1350, 0.03125
        %v1399 = vmul.f32 %v1353, 0.03125
        %v1400 = vmul.f32 %v1356, 0.03125
        %v1401 = vmul.f32 %v1359, 0.03125
        %v1402 = vmul.f32 %v1362, 0.03125
        %v1403 = vmul.f32 %v1365, 0.03125
        %v1404 = vmul.f32 %v1368, 0.03125
        %v1405 = vmul.f32 %v1371, 0.03125
        %v1406 = vmul.f32 %v1374, 0.03125
        %v1407 = vmul.f32 %v1375, %v1375
        %v1408 = vmul.f32 %v1376, %v1376
        %v1409 = vmul.f32 %v1377, %v1377
        %v1410 = vmul.f32 %v1378, %v1378
        %v1411 = vmul.f32 %v1379, %v1379
        %v1412 = vmul.f32 %v1380, %v1380
        %v1413 = vmul.f32 %v1381, %v1381
        %v1414 = vmul.f32 %v1382, %v1382
        %v1415 = vmul.f32 %v1383, %v1383
        %v1416 = vmul.f32 %v1384, %v1384
        %v1417 = vmul.f32 %v1385, %v1385
        %v1418 = vmul.f32 %v1386, %v1386
        %v1419 = vmul.f32 %v1387, %v1387
        %v1420 = vmul.f32 %v1388, %v1388
        %v1421 = vmul.f32 %v1389, %v1389
        %v1422 = vmul.f32 %v1390, %v1390
        %v1423 = vsub.f32 %v1391, %v1407
        %v1424 = vsub.f32 %v1392, %v1408
        %v1425 = vsub.f32 %v1393, %v1409
        %v1426 = vsub.f32 %v1394, %v1410
        %v1427 = vsub.f32 %v1395, %v1411
        %v1428 = vsub.f32 %v1396, %v1412
        %v1429 = vsub.f32 %v1397, %v1413
        %v1430 = vsub.f32 %v1398, %v1414
        %v1431 = vsub.f32 %v1399, %v1415
        %v1432 = vsub.f32 %v1400, %v1416
        %v1433 = vsub.f32 %v1401, %v1417
        %v1434 = vsub.f32 %v1402, %v1418
        %v1435 = vsub.f32 %v1403, %v1419
        %v1436 = vsub.f32 %v1404, %v1420
        %v1437 = vsub.f32 %v1405, %v1421
        %v1438 = vsub.f32 %v1406, %v1422
        %v1439 = vadd.f32 %v1423, 1e-05
        %v1440 = vadd.f32 %v1424, 1e-05
        %v1441 = vadd.f32 %v1425, 1e-05
        %v1442 = vadd.f32 %v1426, 1e-05
        %v1443 = vadd.f32 %v1427, 1e-05
        %v1444 = vadd.f32 %v1428, 1e-05
        %v1445 = vadd.f32 %v1429, 1e-05
        %v1446 = vadd.f32 %v1430, 1e-05
        %v1447 = vadd.f32 %v1431, 1e-05
        %v1448 = vadd.f32 %v1432, 1e-05
        %v1449 = vadd.f32 %v1433, 1e-05
        %v1450 = vadd.f32 %v1434, 1e-05
        %v1451 = vadd.f32 %v1435, 1e-05
        %v1452 = vadd.f32 %v1436, 1e-05
        %v1453 = vadd.f32 %v1437, 1e-05
        %v1454 = vadd.f32 %v1438, 1e-05
        %v1455 = vrsqrt.pop %v1439
        %v1456 = vmul.f32 %v1455, %v1439
        %v1457 = vmul.f32 %v1456, %v1455
        %v1458 = vmul.f32 0.5, %v1457
        %v1459 = vsub.f32 1.5, %v1458
        %v1460 = vmul.f32 %v1455, %v1459
        %vm1461 = vweird.f32 %v1439
        %vm1462 = vweird.f32 %v1455
        %vm1463 = vmor %vm1461, %vm1462
        %v1464 = vsel %vm1463, %v1455, %v1460
        %v1465 = vrsqrt.pop %v1440
        %v1466 = vmul.f32 %v1465, %v1440
        %v1467 = vmul.f32 %v1466, %v1465
        %v1468 = vmul.f32 0.5, %v1467
        %v1469 = vsub.f32 1.5, %v1468
        %v1470 = vmul.f32 %v1465, %v1469
        %vm1471 = vweird.f32 %v1440
        %vm1472 = vweird.f32 %v1465
        %vm1473 = vmor %vm1471, %vm1472
        %v1474 = vsel %vm1473, %v1465, %v1470
        %v1475 = vrsqrt.pop %v1441
        %v1476 = vmul.f32 %v1475, %v1441
        %v1477 = vmul.f32 %v1476, %v1475
        %v1478 = vmul.f32 0.5, %v1477
        %v1479 = vsub.f32 1.5, %v1478
        %v1480 = vmul.f32 %v1475, %v1479
        %vm1481 = vweird.f32 %v1441
        %vm1482 = vweird.f32 %v1475
        %vm1483 = vmor %vm1481, %vm1482
        %v1484 = vsel %vm1483, %v1475, %v1480
        %v1485 = vrsqrt.pop %v1442
        %v1486 = vmul.f32 %v1485, %v1442
        %v1487 = vmul.f32 %v1486, %v1485
        %v1488 = vmul.f32 0.5, %v1487
        %v1489 = vsub.f32 1.5, %v1488
        %v1490 = vmul.f32 %v1485, %v1489
        %vm1491 = vweird.f32 %v1442
        %vm1492 = vweird.f32 %v1485
        %vm1493 = vmor %vm1491, %vm1492
        %v1494 = vsel %vm1493, %v1485, %v1490
        %v1495 = vrsqrt.pop %v1443
        %v1496 = vmul.f32 %v1495, %v1443
        %v1497 = vmul.f32 %v1496, %v1495
        %v1498 = vmul.f32 0.5, %v1497
        %v1499 = vsub.f32 1.5, %v1498
        %v1500 = vmul.f32 %v1495, %v1499
        %vm1501 = vweird.f32 %v1443
        %vm1502 = vweird.f32 %v1495
        %vm1503 = vmor %vm1501, %vm1502
        %v1504 = vsel %vm1503, %v1495, %v1500
        %v1505 = vrsqrt.pop %v1444
        %v1506 = vmul.f32 %v1505, %v1444
        %v1507 = vmul.f32 %v1506, %v1505
        %v1508 = vmul.f32 0.5, %v1507
        %v1509 = vsub.f32 1.5, %v1508
        %v1510 = vmul.f32 %v1505, %v1509
        %vm1511 = vweird.f32 %v1444
        %vm1512 = vweird.f32 %v1505
        %vm1513 = vmor %vm1511, %vm1512
        %v1514 = vsel %vm1513, %v1505, %v1510
        %v1515 = vrsqrt.pop %v1445
        %v1516 = vmul.f32 %v1515, %v1445
        %v1517 = vmul.f32 %v1516, %v1515
        %v1518 = vmul.f32 0.5, %v1517
        %v1519 = vsub.f32 1.5, %v1518
        %v1520 = vmul.f32 %v1515, %v1519
        %vm1521 = vweird.f32 %v1445
        %vm1522 = vweird.f32 %v1515
        %vm1523 = vmor %vm1521, %vm1522
        %v1524 = vsel %vm1523, %v1515, %v1520
        %v1525 = vrsqrt.pop %v1446
        %v1526 = vmul.f32 %v1525, %v1446
        %v1527 = vmul.f32 %v1526, %v1525
        %v1528 = vmul.f32 0.5, %v1527
        %v1529 = vsub.f32 1.5, %v1528
        %v1530 = vmul.f32 %v1525, %v1529
        %vm1531 = vweird.f32 %v1446
        %vm1532 = vweird.f32 %v1525
        %vm1533 = vmor %vm1531, %vm1532
        %v1534 = vsel %vm1533, %v1525, %v1530
        %v1535 = vrsqrt.pop %v1447
        %v1536 = vmul.f32 %v1535, %v1447
        %v1537 = vmul.f32 %v1536, %v1535
        %v1538 = vmul.f32 0.5, %v1537
        %v1539 = vsub.f32 1.5, %v1538
        %v1540 = vmul.f32 %v1535, %v1539
        %vm1541 = vweird.f32 %v1447
        %vm1542 = vweird.f32 %v1535
        %vm1543 = vmor %vm1541, %vm1542
        %v1544 = vsel %vm1543, %v1535, %v1540
        %v1545 = vrsqrt.pop %v1448
        %v1546 = vmul.f32 %v1545, %v1448
        %v1547 = vmul.f32 %v1546, %v1545
        %v1548 = vmul.f32 0.5, %v1547
        %v1549 = vsub.f32 1.5, %v1548
        %v1550 = vmul.f32 %v1545, %v1549
        %vm1551 = vweird.f32 %v1448
        %vm1552 = vweird.f32 %v1545
        %vm1553 = vmor %vm1551, %vm1552
        %v1554 = vsel %vm1553, %v1545, %v1550
        %v1555 = vrsqrt.pop %v1449
        %v1556 = vmul.f32 %v1555, %v1449
        %v1557 = vmul.f32 %v1556, %v1555
        %v1558 = vmul.f32 0.5, %v1557
        %v1559 = vsub.f32 1.5, %v1558
        %v1560 = vmul.f32 %v1555, %v1559
        %vm1561 = vweird.f32 %v1449
        %vm1562 = vweird.f32 %v1555
        %vm1563 = vmor %vm1561, %vm1562
        %v1564 = vsel %vm1563, %v1555, %v1560
        %v1565 = vrsqrt.pop %v1450
        %v1566 = vmul.f32 %v1565, %v1450
        %v1567 = vmul.f32 %v1566, %v1565
        %v1568 = vmul.f32 0.5, %v1567
        %v1569 = vsub.f32 1.5, %v1568
        %v1570 = vmul.f32 %v1565, %v1569
        %vm1571 = vweird.f32 %v1450
        %vm1572 = vweird.f32 %v1565
        %vm1573 = vmor %vm1571, %vm1572
        %v1574 = vsel %vm1573, %v1565, %v1570
        %v1575 = vrsqrt.pop %v1451
        %v1576 = vmul.f32 %v1575, %v1451
        %v1577 = vmul.f32 %v1576, %v1575
        %v1578 = vmul.f32 0.5, %v1577
        %v1579 = vsub.f32 1.5, %v1578
        %v1580 = vmul.f32 %v1575, %v1579
        %vm1581 = vweird.f32 %v1451
        %vm1582 = vweird.f32 %v1575
        %vm1583 = vmor %vm1581, %vm1582
        %v1584 = vsel %vm1583, %v1575, %v1580
        %v1585 = vrsqrt.pop %v1452
        %v1586 = vmul.f32 %v1585, %v1452
        %v1587 = vmul.f32 %v1586, %v1585
        %v1588 = vmul.f32 0.5, %v1587
        %v1589 = vsub.f32 1.5, %v1588
        %v1590 = vmul.f32 %v1585, %v1589
        %vm1591 = vweird.f32 %v1452
        %vm1592 = vweird.f32 %v1585
        %vm1593 = vmor %vm1591, %vm1592
        %v1594 = vsel %vm1593, %v1585, %v1590
        %v1595 = vrsqrt.pop %v1453
        %v1596 = vmul.f32 %v1595, %v1453
        %v1597 = vmul.f32 %v1596, %v1595
        %v1598 = vmul.f32 0.5, %v1597
        %v1599 = vsub.f32 1.5, %v1598
        %v1600 = vmul.f32 %v1595, %v1599
        %vm1601 = vweird.f32 %v1453
        %vm1602 = vweird.f32 %v1595
        %vm1603 = vmor %vm1601, %vm1602
        %v1604 = vsel %vm1603, %v1595, %v1600
        %v1605 = vrsqrt.pop %v1454
        %v1606 = vmul.f32 %v1605, %v1454
        %v1607 = vmul.f32 %v1606, %v1605
        %v1608 = vmul.f32 0.5, %v1607
        %v1609 = vsub.f32 1.5, %v1608
        %v1610 = vmul.f32 %v1605, %v1609
        %vm1611 = vweird.f32 %v1454
        %vm1612 = vweird.f32 %v1605
        %vm1613 = vmor %vm1611, %vm1612
        %v1614 = vsel %vm1613, %v1605, %v1610
        %v1615 = vsub.f32 %v1245, %v1375
        %v1616 = vsub.f32 %v1246, %v1376
        %v1617 = vsub.f32 %v1247, %v1377
        %v1618 = vsub.f32 %v1248, %v1378
        %v1619 = vsub.f32 %v1249, %v1379
        %v1620 = vsub.f32 %v1250, %v1380
        %v1621 = vsub.f32 %v1251, %v1381
        %v1622 = vsub.f32 %v1252, %v1382
        %v1623 = vsub.f32 %v1253, %v1383
        %v1624 = vsub.f32 %v1254, %v1384
        %v1625 = vsub.f32 %v1255, %v1385
        %v1626 = vsub.f32 %v1256, %v1386
        %v1627 = vsub.f32 %v1257, %v1387
        %v1628 = vsub.f32 %v1258, %v1388
        %v1629 = vsub.f32 %v1259, %v1389
        %v1630 = vsub.f32 %v1260, %v1390
        %v1631 = vmul.f32 %v1615, %v1464
        %v1632 = vmul.f32 %v1616, %v1474
        %v1633 = vmul.f32 %v1617, %v1484
        %v1634 = vmul.f32 %v1618, %v1494
        %v1635 = vmul.f32 %v1619, %v1504
        %v1636 = vmul.f32 %v1620, %v1514
        %v1637 = vmul.f32 %v1621, %v1524
        %v1638 = vmul.f32 %v1622, %v1534
        %v1639 = vmul.f32 %v1623, %v1544
        %v1640 = vmul.f32 %v1624, %v1554
        %v1641 = vmul.f32 %v1625, %v1564
        %v1642 = vmul.f32 %v1626, %v1574
        %v1643 = vmul.f32 %v1627, %v1584
        %v1644 = vmul.f32 %v1628, %v1594
        %v1645 = vmul.f32 %v1629, %v1604
        %v1646 = vmul.f32 %v1630, %v1614
        %v1647 = vperm.slane %v1261, 0
        %v1648 = vmul.f32 %v1631, %v1647
        %v1649 = vmul.f32 %v1632, %v1647
        %v1650 = vmul.f32 %v1633, %v1647
        %v1651 = vmul.f32 %v1634, %v1647
        %v1652 = vmul.f32 %v1635, %v1647
        %v1653 = vmul.f32 %v1636, %v1647
        %v1654 = vmul.f32 %v1637, %v1647
        %v1655 = vmul.f32 %v1638, %v1647
        %v1656 = vmul.f32 %v1639, %v1647
        %v1657 = vmul.f32 %v1640, %v1647
        %v1658 = vmul.f32 %v1641, %v1647
        %v1659 = vmul.f32 %v1642, %v1647
        %v1660 = vmul.f32 %v1643, %v1647
        %v1661 = vmul.f32 %v1644, %v1647
        %v1662 = vmul.f32 %v1645, %v1647
        %v1663 = vmul.f32 %v1646, %v1647
        %v1664 = vperm.slane %v1262, 0
        %v1665 = vadd.f32 %v1648, %v1664
        %v1666 = vadd.f32 %v1649, %v1664
        %v1667 = vadd.f32 %v1650, %v1664
        %v1668 = vadd.f32 %v1651, %v1664
        %v1669 = vadd.f32 %v1652, %v1664
        %v1670 = vadd.f32 %v1653, %v1664
        %v1671 = vadd.f32 %v1654, %v1664
        %v1672 = vadd.f32 %v1655, %v1664
        %v1673 = vadd.f32 %v1656, %v1664
        %v1674 = vadd.f32 %v1657, %v1664
        %v1675 = vadd.f32 %v1658, %v1664
        %v1676 = vadd.f32 %v1659, %v1664
        %v1677 = vadd.f32 %v1660, %v1664
        %v1678 = vadd.f32 %v1661, %v1664
        %v1679 = vadd.f32 %v1662, %v1664
        %v1680 = vadd.f32 %v1663, %v1664
        %v1681 = vpack.c.bf16 %v1666, %v1665
        %v1682 = vpack.c.bf16 %v1668, %v1667
        %v1683 = vpack.c.bf16 %v1670, %v1669
        %v1684 = vpack.c.bf16 %v1672, %v1671
        %v1685 = vpack.c.bf16 %v1674, %v1673
        %v1686 = vpack.c.bf16 %v1676, %v1675
        %v1687 = vpack.c.bf16 %v1678, %v1677
        %v1688 = vpack.c.bf16 %v1680, %v1679
        %s1689 = scalar_lea.vmem %s5, 16
        %v1690 = vld [vmem:[%s1689] sm:$0xf]
        %v1691 = vld [vmem:[%s1689 + $0x4] sm:$0xf]
        %v1692 = vld [vmem:[%s1689 + $0x8] sm:$0xf]
        %v1693 = vld [vmem:[%s1689 + $0xc] sm:$0xf]
        %v1694 = vld [vmem:[%s6 + $0x1] sm:$0x1]
        %v1695 = vperm.slane %v1694, 0
        %v1700 = vunpack.c.l.b16 %v1690
        %v1701 = vunpack.c.l.b16 %v1691
        %v1702 = vunpack.c.l.b16 %v1692
        %v1703 = vunpack.c.l.b16 %v1693
        %v1704 = vpack.c.b16 %v1701, %v1700
        %v1705 = vpack.c.b16 %v1703, %v1702
        %v1709 = vsel %vm595, %v1681, 0
        %v1712 = vsel %vm595, %v1682, 0
        %v1715 = vsel %vm595, %v1683, 0
        %v1718 = vsel %vm595, %v1684, 0
        %v1721 = vsel %vm595, %v1685, 0
        %v1724 = vsel %vm595, %v1686, 0
        %v1727 = vsel %vm595, %v1687, 0
        %v1730 = vsel %vm595, %v1688, 0
        %1732 = vmatpush.bf16.msra.mxu0 0
        %1733 = vmatpush.bf16.msra.mxu0 0
        %1734 = vmatpush.bf16.msra.mxu0 0
        %1735 = vmatpush.bf16.msra.mxu0 0
        %1736 = vmatpush.bf16.msra.mxu0 0
        %1737 = vmatpush.bf16.msra.mxu0 0
        %1738 = vmatpush.bf16.msra.mxu0 %v1705
        %1739 = vmatpush.bf16.msra.mxu0 %v1704
        %1740 = vmatmul.bf16.gmra.mxu0 %v1709
        %v1741 = vpop.f32.mrf.mxu0
        %v1742 = vadd.f32 %v1695, %v1741
        %v1743 = vpop.f32.mrf.mxu0
        %v1744 = vadd.f32 %v1695, %v1743
        %1745 = vmatmul.bf16.gmra.mxu0 %v1712
        %v1746 = vpop.f32.mrf.mxu0
        %v1747 = vadd.f32 %v1695, %v1746
        %v1748 = vpop.f32.mrf.mxu0
        %v1749 = vadd.f32 %v1695, %v1748
        %1750 = vmatmul.bf16.gmra.mxu0 %v1715
        %v1751 = vpop.f32.mrf.mxu0
        %v1752 = vadd.f32 %v1695, %v1751
        %v1753 = vpop.f32.mrf.mxu0
        %v1754 = vadd.f32 %v1695, %v1753
        %1755 = vmatmul.bf16.gmra.mxu0 %v1718
        %v1756 = vpop.f32.mrf.mxu0
        %v1757 = vadd.f32 %v1695, %v1756
        %v1758 = vpop.f32.mrf.mxu0
        %v1759 = vadd.f32 %v1695, %v1758
        %1760 = vmatmul.bf16.gmra.mxu0 %v1721
        %v1761 = vpop.f32.mrf.mxu0
        %v1762 = vadd.f32 %v1695, %v1761
        %v1763 = vpop.f32.mrf.mxu0
        %v1764 = vadd.f32 %v1695, %v1763
        %1765 = vmatmul.bf16.gmra.mxu0 %v1724
        %v1766 = vpop.f32.mrf.mxu0
        %v1767 = vadd.f32 %v1695, %v1766
        %v1768 = vpop.f32.mrf.mxu0
        %v1769 = vadd.f32 %v1695, %v1768
        %1770 = vmatmul.bf16.gmra.mxu0 %v1727
        %v1771 = vpop.f32.mrf.mxu0
        %v1772 = vadd.f32 %v1695, %v1771
        %v1773 = vpop.f32.mrf.mxu0
        %v1774 = vadd.f32 %v1695, %v1773
        %1775 = vmatmul.bf16.gmra.mxu0 %v1730
        %v1776 = vpop.f32.mrf.mxu0
        %v1777 = vadd.f32 %v1695, %v1776
        %v1778 = vpop.f32.mrf.mxu0
        %v1779 = vadd.f32 %v1695, %v1778
        %1780 = vdwg.mxu0
        %v1781 = vmax.f32 %v1742, 0.0
        %v1782 = vmax.f32 %v1744, 0.0
        %v1783 = vmax.f32 %v1747, 0.0
        %v1784 = vmax.f32 %v1749, 0.0
        %v1785 = vmax.f32 %v1752, 0.0
        %v1786 = vmax.f32 %v1754, 0.0
        %v1787 = vmax.f32 %v1757, 0.0
        %v1788 = vmax.f32 %v1759, 0.0
        %v1789 = vmax.f32 %v1762, 0.0
        %v1790 = vmax.f32 %v1764, 0.0
        %v1791 = vmax.f32 %v1767, 0.0
        %v1792 = vmax.f32 %v1769, 0.0
        %v1793 = vmax.f32 %v1772, 0.0
        %v1794 = vmax.f32 %v1774, 0.0
        %v1795 = vmax.f32 %v1777, 0.0
        %v1796 = vmax.f32 %v1779, 0.0
        %v1797 = vpack.c.bf16 %v1782, %v1781
        %v1798 = vpack.c.bf16 %v1784, %v1783
        %v1799 = vpack.c.bf16 %v1786, %v1785
        %v1800 = vpack.c.bf16 %v1788, %v1787
        %v1801 = vpack.c.bf16 %v1790, %v1789
        %v1802 = vpack.c.bf16 %v1792, %v1791
        %v1803 = vpack.c.bf16 %v1794, %v1793
        %v1804 = vpack.c.bf16 %v1796, %v1795
        %s1805 = scalar_lea.vmem %s7, 32
        %v1806 = vld [vmem:[%s1805] sm:$0xf]
        %v1807 = vld [vmem:[%s1805 + $0x4] sm:$0xf]
        %v1808 = vld [vmem:[%s1805 + $0x8] sm:$0xf]
        %v1809 = vld [vmem:[%s1805 + $0xc] sm:$0xf]
        %v1810 = vld [vmem:[%s1805 + $0x10] sm:$0xf]
        %v1811 = vld [vmem:[%s1805 + $0x14] sm:$0xf]
        %v1812 = vld [vmem:[%s1805 + $0x18] sm:$0xf]
        %v1813 = vld [vmem:[%s1805 + $0x1c] sm:$0xf]
        %v1814 = vld [vmem:[%s8 + $0x1] sm:$0x1]
        %v1815 = vperm.slane %v1814, 0
        %v1824 = vunpack.c.l.b16 %v1806
        %v1825 = vunpack.c.l.b16 %v1807
        %v1826 = vunpack.c.l.b16 %v1808
        %v1827 = vunpack.c.l.b16 %v1809
        %v1828 = vunpack.c.l.b16 %v1810
        %v1829 = vunpack.c.l.b16 %v1811
        %v1830 = vunpack.c.l.b16 %v1812
        %v1831 = vunpack.c.l.b16 %v1813
        %v1832 = vpack.c.b16 %v1825, %v1824
        %v1833 = vpack.c.b16 %v1827, %v1826
        %v1834 = vpack.c.b16 %v1829, %v1828
        %v1835 = vpack.c.b16 %v1831, %v1830
        %v1841 = vsel %vm1171, %v1797, 0
        %v1844 = vsel %vm1171, %v1798, 0
        %v1847 = vsel %vm1171, %v1799, 0
        %v1850 = vsel %vm1171, %v1800, 0
        %v1853 = vsel %vm1171, %v1801, 0
        %v1856 = vsel %vm1171, %v1802, 0
        %v1859 = vsel %vm1171, %v1803, 0
        %v1862 = vsel %vm1171, %v1804, 0
        %1864 = vmatpush.bf16.msra.mxu0 0
        %1865 = vmatpush.bf16.msra.mxu0 0
        %1866 = vmatpush.bf16.msra.mxu0 0
        %1867 = vmatpush.bf16.msra.mxu0 0
        %1868 = vmatpush.bf16.msra.mxu0 %v1835
        %1869 = vmatpush.bf16.msra.mxu0 %v1834
        %1870 = vmatpush.bf16.msra.mxu0 %v1833
        %1871 = vmatpush.bf16.msra.mxu0 %v1832
        %1872 = vmatmul.bf16.gmra.mxu0 %v1841
        %v1873 = vpop.f32.mrf.mxu0
        %v1874 = vadd.f32 %v1815, %v1873
        %v1875 = vpop.f32.mrf.mxu0
        %v1876 = vadd.f32 %v1815, %v1875
        %1877 = vmatmul.bf16.gmra.mxu0 %v1844
        %v1878 = vpop.f32.mrf.mxu0
        %v1879 = vadd.f32 %v1815, %v1878
        %v1880 = vpop.f32.mrf.mxu0
        %v1881 = vadd.f32 %v1815, %v1880
        %1882 = vmatmul.bf16.gmra.mxu0 %v1847
        %v1883 = vpop.f32.mrf.mxu0
        %v1884 = vadd.f32 %v1815, %v1883
        %v1885 = vpop.f32.mrf.mxu0
        %v1886 = vadd.f32 %v1815, %v1885
        %1887 = vmatmul.bf16.gmra.mxu0 %v1850
        %v1888 = vpop.f32.mrf.mxu0
        %v1889 = vadd.f32 %v1815, %v1888
        %v1890 = vpop.f32.mrf.mxu0
        %v1891 = vadd.f32 %v1815, %v1890
        %1892 = vmatmul.bf16.gmra.mxu0 %v1853
        %v1893 = vpop.f32.mrf.mxu0
        %v1894 = vadd.f32 %v1815, %v1893
        %v1895 = vpop.f32.mrf.mxu0
        %v1896 = vadd.f32 %v1815, %v1895
        %1897 = vmatmul.bf16.gmra.mxu0 %v1856
        %v1898 = vpop.f32.mrf.mxu0
        %v1899 = vadd.f32 %v1815, %v1898
        %v1900 = vpop.f32.mrf.mxu0
        %v1901 = vadd.f32 %v1815, %v1900
        %1902 = vmatmul.bf16.gmra.mxu0 %v1859
        %v1903 = vpop.f32.mrf.mxu0
        %v1904 = vadd.f32 %v1815, %v1903
        %v1905 = vpop.f32.mrf.mxu0
        %v1906 = vadd.f32 %v1815, %v1905
        %1907 = vmatmul.bf16.gmra.mxu0 %v1862
        %v1908 = vpop.f32.mrf.mxu0
        %v1909 = vadd.f32 %v1815, %v1908
        %v1910 = vpop.f32.mrf.mxu0
        %v1911 = vadd.f32 %v1815, %v1910
        %1912 = vdwg.mxu0
        %v1913 = vadd.f32 %v1245, %v1874
        %v1914 = vadd.f32 %v1246, %v1876
        %v1915 = vadd.f32 %v1247, %v1879
        %v1916 = vadd.f32 %v1248, %v1881
        %v1917 = vadd.f32 %v1249, %v1884
        %v1918 = vadd.f32 %v1250, %v1886
        %v1919 = vadd.f32 %v1251, %v1889
        %v1920 = vadd.f32 %v1252, %v1891
        %v1921 = vadd.f32 %v1253, %v1894
        %v1922 = vadd.f32 %v1254, %v1896
        %v1923 = vadd.f32 %v1255, %v1899
        %v1924 = vadd.f32 %v1256, %v1901
        %v1925 = vadd.f32 %v1257, %v1904
        %v1926 = vadd.f32 %v1258, %v1906
        %v1927 = vadd.f32 %v1259, %v1909
        %v1928 = vadd.f32 %v1260, %v1911
        %v1929 = vld [vmem:[%s9] sm:$0x1]
        %v1930 = vld [vmem:[%s10] sm:$0x1]
        %v1931 = vsel %vm595, %v1913, 0.0
        %1932 = vadd.xlane.f32.xlu0 %v1931
        %v1933 = vpop.xlane.xlu0 %1932
        %v1934 = vsel %vm595, %v1914, 0.0
        %1935 = vadd.xlane.f32.xlu0 %v1934
        %v1936 = vpop.xlane.xlu0 %1935
        %v1937 = vsel %vm595, %v1915, 0.0
        %1938 = vadd.xlane.f32.xlu0 %v1937
        %v1939 = vpop.xlane.xlu0 %1938
        %v1940 = vsel %vm595, %v1916, 0.0
        %1941 = vadd.xlane.f32.xlu0 %v1940
        %v1942 = vpop.xlane.xlu0 %1941
        %v1943 = vsel %vm595, %v1917, 0.0
        %1944 = vadd.xlane.f32.xlu0 %v1943
        %v1945 = vpop.xlane.xlu0 %1944
        %v1946 = vsel %vm595, %v1918, 0.0
        %1947 = vadd.xlane.f32.xlu0 %v1946
        %v1948 = vpop.xlane.xlu0 %1947
        %v1949 = vsel %vm595, %v1919, 0.0
        %1950 = vadd.xlane.f32.xlu0 %v1949
        %v1951 = vpop.xlane.xlu0 %1950
        %v1952 = vsel %vm595, %v1920, 0.0
        %1953 = vadd.xlane.f32.xlu0 %v1952
        %v1954 = vpop.xlane.xlu0 %1953
        %v1955 = vsel %vm595, %v1921, 0.0
        %1956 = vadd.xlane.f32.xlu0 %v1955
        %v1957 = vpop.xlane.xlu0 %1956
        %v1958 = vsel %vm595, %v1922, 0.0
        %1959 = vadd.xlane.f32.xlu0 %v1958
        %v1960 = vpop.xlane.xlu0 %1959
        %v1961 = vsel %vm595, %v1923, 0.0
        %1962 = vadd.xlane.f32.xlu0 %v1961
        %v1963 = vpop.xlane.xlu0 %1962
        %v1964 = vsel %vm595, %v1924, 0.0
        %1965 = vadd.xlane.f32.xlu0 %v1964
        %v1966 = vpop.xlane.xlu0 %1965
        %v1967 = vsel %vm595, %v1925, 0.0
        %1968 = vadd.xlane.f32.xlu0 %v1967
        %v1969 = vpop.xlane.xlu0 %1968
        %v1970 = vsel %vm595, %v1926, 0.0
        %1971 = vadd.xlane.f32.xlu0 %v1970
        %v1972 = vpop.xlane.xlu0 %1971
        %v1973 = vsel %vm595, %v1927, 0.0
        %1974 = vadd.xlane.f32.xlu0 %v1973
        %v1975 = vpop.xlane.xlu0 %1974
        %v1976 = vsel %vm595, %v1928, 0.0
        %1977 = vadd.xlane.f32.xlu0 %v1976
        %v1978 = vpop.xlane.xlu0 %1977
        %v1979 = vmul.f32 %v1913, %v1913
        %v1980 = vmul.f32 %v1914, %v1914
        %v1981 = vmul.f32 %v1915, %v1915
        %v1982 = vmul.f32 %v1916, %v1916
        %v1983 = vmul.f32 %v1917, %v1917
        %v1984 = vmul.f32 %v1918, %v1918
        %v1985 = vmul.f32 %v1919, %v1919
        %v1986 = vmul.f32 %v1920, %v1920
        %v1987 = vmul.f32 %v1921, %v1921
        %v1988 = vmul.f32 %v1922, %v1922
        %v1989 = vmul.f32 %v1923, %v1923
        %v1990 = vmul.f32 %v1924, %v1924
        %v1991 = vmul.f32 %v1925, %v1925
        %v1992 = vmul.f32 %v1926, %v1926
        %v1993 = vmul.f32 %v1927, %v1927
        %v1994 = vmul.f32 %v1928, %v1928
        %v1995 = vsel %vm595, %v1979, 0.0
        %1996 = vadd.xlane.f32.xlu0 %v1995
        %v1997 = vpop.xlane.xlu0 %1996
        %v1998 = vsel %vm595, %v1980, 0.0
        %1999 = vadd.xlane.f32.xlu0 %v1998
        %v2000 = vpop.xlane.xlu0 %1999
        %v2001 = vsel %vm595, %v1981, 0.0
        %2002 = vadd.xlane.f32.xlu0 %v2001
        %v2003 = vpop.xlane.xlu0 %2002
        %v2004 = vsel %vm595, %v1982, 0.0
        %2005 = vadd.xlane.f32.xlu0 %v2004
        %v2006 = vpop.xlane.xlu0 %2005
        %v2007 = vsel %vm595, %v1983, 0.0
        %2008 = vadd.xlane.f32.xlu0 %v2007
        %v2009 = vpop.xlane.xlu0 %2008
        %v2010 = vsel %vm595, %v1984, 0.0
        %2011 = vadd.xlane.f32.xlu0 %v2010
        %v2012 = vpop.xlane.xlu0 %2011
        %v2013 = vsel %vm595, %v1985, 0.0
        %2014 = vadd.xlane.f32.xlu0 %v2013
        %v2015 = vpop.xlane.xlu0 %2014
        %v2016 = vsel %vm595, %v1986, 0.0
        %2017 = vadd.xlane.f32.xlu0 %v2016
        %v2018 = vpop.xlane.xlu0 %2017
        %v2019 = vsel %vm595, %v1987, 0.0
        %2020 = vadd.xlane.f32.xlu0 %v2019
        %v2021 = vpop.xlane.xlu0 %2020
        %v2022 = vsel %vm595, %v1988, 0.0
        %2023 = vadd.xlane.f32.xlu0 %v2022
        %v2024 = vpop.xlane.xlu0 %2023
        %v2025 = vsel %vm595, %v1989, 0.0
        %2026 = vadd.xlane.f32.xlu0 %v2025
        %v2027 = vpop.xlane.xlu0 %2026
        %v2028 = vsel %vm595, %v1990, 0.0
        %2029 = vadd.xlane.f32.xlu0 %v2028
        %v2030 = vpop.xlane.xlu0 %2029
        %v2031 = vsel %vm595, %v1991, 0.0
        %2032 = vadd.xlane.f32.xlu0 %v2031
        %v2033 = vpop.xlane.xlu0 %2032
        %v2034 = vsel %vm595, %v1992, 0.0
        %2035 = vadd.xlane.f32.xlu0 %v2034
        %v2036 = vpop.xlane.xlu0 %2035
        %v2037 = vsel %vm595, %v1993, 0.0
        %2038 = vadd.xlane.f32.xlu0 %v2037
        %v2039 = vpop.xlane.xlu0 %2038
        %v2040 = vsel %vm595, %v1994, 0.0
        %2041 = vadd.xlane.f32.xlu0 %v2040
        %v2042 = vpop.xlane.xlu0 %2041
        %v2043 = vmul.f32 %v1933, 0.03125
        %v2044 = vmul.f32 %v1936, 0.03125
        %v2045 = vmul.f32 %v1939, 0.03125
        %v2046 = vmul.f32 %v1942, 0.03125
        %v2047 = vmul.f32 %v1945, 0.03125
        %v2048 = vmul.f32 %v1948, 0.03125
        %v2049 = vmul.f32 %v1951, 0.03125
        %v2050 = vmul.f32 %v1954, 0.03125
        %v2051 = vmul.f32 %v1957, 0.03125
        %v2052 = vmul.f32 %v1960, 0.03125
        %v2053 = vmul.f32 %v1963, 0.03125
        %v2054 = vmul.f32 %v1966, 0.03125
        %v2055 = vmul.f32 %v1969, 0.03125
        %v2056 = vmul.f32 %v1972, 0.03125
        %v2057 = vmul.f32 %v1975, 0.03125
        %v2058 = vmul.f32 %v1978, 0.03125
        %v2059 = vmul.f32 %v1997, 0.03125
        %v2060 = vmul.f32 %v2000, 0.03125
        %v2061 = vmul.f32 %v2003, 0.03125
        %v2062 = vmul.f32 %v2006, 0.03125
        %v2063 = vmul.f32 %v2009, 0.03125
        %v2064 = vmul.f32 %v2012, 0.03125
        %v2065 = vmul.f32 %v2015, 0.03125
        %v2066 = vmul.f32 %v2018, 0.03125
        %v2067 = vmul.f32 %v2021, 0.03125
        %v2068 = vmul.f32 %v2024, 0.03125
        %v2069 = vmul.f32 %v2027, 0.03125
        %v2070 = vmul.f32 %v2030, 0.03125
        %v2071 = vmul.f32 %v2033, 0.03125
        %v2072 = vmul.f32 %v2036, 0.03125
        %v2073 = vmul.f32 %v2039, 0.03125
        %v2074 = vmul.f32 %v2042, 0.03125
        %v2075 = vmul.f32 %v2043, %v2043
        %v2076 = vmul.f32 %v2044, %v2044
        %v2077 = vmul.f32 %v2045, %v2045
        %v2078 = vmul.f32 %v2046, %v2046
        %v2079 = vmul.f32 %v2047, %v2047
        %v2080 = vmul.f32 %v2048, %v2048
        %v2081 = vmul.f32 %v2049, %v2049
        %v2082 = vmul.f32 %v2050, %v2050
        %v2083 = vmul.f32 %v2051, %v2051
        %v2084 = vmul.f32 %v2052, %v2052
        %v2085 = vmul.f32 %v2053, %v2053
        %v2086 = vmul.f32 %v2054, %v2054
        %v2087 = vmul.f32 %v2055, %v2055
        %v2088 = vmul.f32 %v2056, %v2056
        %v2089 = vmul.f32 %v2057, %v2057
        %v2090 = vmul.f32 %v2058, %v2058
        %v2091 = vsub.f32 %v2059, %v2075
        %v2092 = vsub.f32 %v2060, %v2076
        %v2093 = vsub.f32 %v2061, %v2077
        %v2094 = vsub.f32 %v2062, %v2078
        %v2095 = vsub.f32 %v2063, %v2079
        %v2096 = vsub.f32 %v2064, %v2080
        %v2097 = vsub.f32 %v2065, %v2081
        %v2098 = vsub.f32 %v2066, %v2082
        %v2099 = vsub.f32 %v2067, %v2083
        %v2100 = vsub.f32 %v2068, %v2084
        %v2101 = vsub.f32 %v2069, %v2085
        %v2102 = vsub.f32 %v2070, %v2086
        %v2103 = vsub.f32 %v2071, %v2087
        %v2104 = vsub.f32 %v2072, %v2088
        %v2105 = vsub.f32 %v2073, %v2089
        %v2106 = vsub.f32 %v2074, %v2090
        %v2107 = vadd.f32 %v2091, 1e-05
        %v2108 = vadd.f32 %v2092, 1e-05
        %v2109 = vadd.f32 %v2093, 1e-05
        %v2110 = vadd.f32 %v2094, 1e-05
        %v2111 = vadd.f32 %v2095, 1e-05
        %v2112 = vadd.f32 %v2096, 1e-05
        %v2113 = vadd.f32 %v2097, 1e-05
        %v2114 = vadd.f32 %v2098, 1e-05
        %v2115 = vadd.f32 %v2099, 1e-05
        %v2116 = vadd.f32 %v2100, 1e-05
        %v2117 = vadd.f32 %v2101, 1e-05
        %v2118 = vadd.f32 %v2102, 1e-05
        %v2119 = vadd.f32 %v2103, 1e-05
        %v2120 = vadd.f32 %v2104, 1e-05
        %v2121 = vadd.f32 %v2105, 1e-05
        %v2122 = vadd.f32 %v2106, 1e-05
        %v2123 = vrsqrt.pop %v2107
        %v2124 = vmul.f32 %v2123, %v2107
        %v2125 = vmul.f32 %v2124, %v2123
        %v2126 = vmul.f32 0.5, %v2125
        %v2127 = vsub.f32 1.5, %v2126
        %v2128 = vmul.f32 %v2123, %v2127
        %vm2129 = vweird.f32 %v2107
        %vm2130 = vweird.f32 %v2123
        %vm2131 = vmor %vm2129, %vm2130
        %v2132 = vsel %vm2131, %v2123, %v2128
        %v2133 = vrsqrt.pop %v2108
        %v2134 = vmul.f32 %v2133, %v2108
        %v2135 = vmul.f32 %v2134, %v2133
        %v2136 = vmul.f32 0.5, %v2135
        %v2137 = vsub.f32 1.5, %v2136
        %v2138 = vmul.f32 %v2133, %v2137
        %vm2139 = vweird.f32 %v2108
        %vm2140 = vweird.f32 %v2133
        %vm2141 = vmor %vm2139, %vm2140
        %v2142 = vsel %vm2141, %v2133, %v2138
        %v2143 = vrsqrt.pop %v2109
        %v2144 = vmul.f32 %v2143, %v2109
        %v2145 = vmul.f32 %v2144, %v2143
        %v2146 = vmul.f32 0.5, %v2145
        %v2147 = vsub.f32 1.5, %v2146
        %v2148 = vmul.f32 %v2143, %v2147
        %vm2149 = vweird.f32 %v2109
        %vm2150 = vweird.f32 %v2143
        %vm2151 = vmor %vm2149, %vm2150
        %v2152 = vsel %vm2151, %v2143, %v2148
        %v2153 = vrsqrt.pop %v2110
        %v2154 = vmul.f32 %v2153, %v2110
        %v2155 = vmul.f32 %v2154, %v2153
        %v2156 = vmul.f32 0.5, %v2155
        %v2157 = vsub.f32 1.5, %v2156
        %v2158 = vmul.f32 %v2153, %v2157
        %vm2159 = vweird.f32 %v2110
        %vm2160 = vweird.f32 %v2153
        %vm2161 = vmor %vm2159, %vm2160
        %v2162 = vsel %vm2161, %v2153, %v2158
        %v2163 = vrsqrt.pop %v2111
        %v2164 = vmul.f32 %v2163, %v2111
        %v2165 = vmul.f32 %v2164, %v2163
        %v2166 = vmul.f32 0.5, %v2165
        %v2167 = vsub.f32 1.5, %v2166
        %v2168 = vmul.f32 %v2163, %v2167
        %vm2169 = vweird.f32 %v2111
        %vm2170 = vweird.f32 %v2163
        %vm2171 = vmor %vm2169, %vm2170
        %v2172 = vsel %vm2171, %v2163, %v2168
        %v2173 = vrsqrt.pop %v2112
        %v2174 = vmul.f32 %v2173, %v2112
        %v2175 = vmul.f32 %v2174, %v2173
        %v2176 = vmul.f32 0.5, %v2175
        %v2177 = vsub.f32 1.5, %v2176
        %v2178 = vmul.f32 %v2173, %v2177
        %vm2179 = vweird.f32 %v2112
        %vm2180 = vweird.f32 %v2173
        %vm2181 = vmor %vm2179, %vm2180
        %v2182 = vsel %vm2181, %v2173, %v2178
        %v2183 = vrsqrt.pop %v2113
        %v2184 = vmul.f32 %v2183, %v2113
        %v2185 = vmul.f32 %v2184, %v2183
        %v2186 = vmul.f32 0.5, %v2185
        %v2187 = vsub.f32 1.5, %v2186
        %v2188 = vmul.f32 %v2183, %v2187
        %vm2189 = vweird.f32 %v2113
        %vm2190 = vweird.f32 %v2183
        %vm2191 = vmor %vm2189, %vm2190
        %v2192 = vsel %vm2191, %v2183, %v2188
        %v2193 = vrsqrt.pop %v2114
        %v2194 = vmul.f32 %v2193, %v2114
        %v2195 = vmul.f32 %v2194, %v2193
        %v2196 = vmul.f32 0.5, %v2195
        %v2197 = vsub.f32 1.5, %v2196
        %v2198 = vmul.f32 %v2193, %v2197
        %vm2199 = vweird.f32 %v2114
        %vm2200 = vweird.f32 %v2193
        %vm2201 = vmor %vm2199, %vm2200
        %v2202 = vsel %vm2201, %v2193, %v2198
        %v2203 = vrsqrt.pop %v2115
        %v2204 = vmul.f32 %v2203, %v2115
        %v2205 = vmul.f32 %v2204, %v2203
        %v2206 = vmul.f32 0.5, %v2205
        %v2207 = vsub.f32 1.5, %v2206
        %v2208 = vmul.f32 %v2203, %v2207
        %vm2209 = vweird.f32 %v2115
        %vm2210 = vweird.f32 %v2203
        %vm2211 = vmor %vm2209, %vm2210
        %v2212 = vsel %vm2211, %v2203, %v2208
        %v2213 = vrsqrt.pop %v2116
        %v2214 = vmul.f32 %v2213, %v2116
        %v2215 = vmul.f32 %v2214, %v2213
        %v2216 = vmul.f32 0.5, %v2215
        %v2217 = vsub.f32 1.5, %v2216
        %v2218 = vmul.f32 %v2213, %v2217
        %vm2219 = vweird.f32 %v2116
        %vm2220 = vweird.f32 %v2213
        %vm2221 = vmor %vm2219, %vm2220
        %v2222 = vsel %vm2221, %v2213, %v2218
        %v2223 = vrsqrt.pop %v2117
        %v2224 = vmul.f32 %v2223, %v2117
        %v2225 = vmul.f32 %v2224, %v2223
        %v2226 = vmul.f32 0.5, %v2225
        %v2227 = vsub.f32 1.5, %v2226
        %v2228 = vmul.f32 %v2223, %v2227
        %vm2229 = vweird.f32 %v2117
        %vm2230 = vweird.f32 %v2223
        %vm2231 = vmor %vm2229, %vm2230
        %v2232 = vsel %vm2231, %v2223, %v2228
        %v2233 = vrsqrt.pop %v2118
        %v2234 = vmul.f32 %v2233, %v2118
        %v2235 = vmul.f32 %v2234, %v2233
        %v2236 = vmul.f32 0.5, %v2235
        %v2237 = vsub.f32 1.5, %v2236
        %v2238 = vmul.f32 %v2233, %v2237
        %vm2239 = vweird.f32 %v2118
        %vm2240 = vweird.f32 %v2233
        %vm2241 = vmor %vm2239, %vm2240
        %v2242 = vsel %vm2241, %v2233, %v2238
        %v2243 = vrsqrt.pop %v2119
        %v2244 = vmul.f32 %v2243, %v2119
        %v2245 = vmul.f32 %v2244, %v2243
        %v2246 = vmul.f32 0.5, %v2245
        %v2247 = vsub.f32 1.5, %v2246
        %v2248 = vmul.f32 %v2243, %v2247
        %vm2249 = vweird.f32 %v2119
        %vm2250 = vweird.f32 %v2243
        %vm2251 = vmor %vm2249, %vm2250
        %v2252 = vsel %vm2251, %v2243, %v2248
        %v2253 = vrsqrt.pop %v2120
        %v2254 = vmul.f32 %v2253, %v2120
        %v2255 = vmul.f32 %v2254, %v2253
        %v2256 = vmul.f32 0.5, %v2255
        %v2257 = vsub.f32 1.5, %v2256
        %v2258 = vmul.f32 %v2253, %v2257
        %vm2259 = vweird.f32 %v2120
        %vm2260 = vweird.f32 %v2253
        %vm2261 = vmor %vm2259, %vm2260
        %v2262 = vsel %vm2261, %v2253, %v2258
        %v2263 = vrsqrt.pop %v2121
        %v2264 = vmul.f32 %v2263, %v2121
        %v2265 = vmul.f32 %v2264, %v2263
        %v2266 = vmul.f32 0.5, %v2265
        %v2267 = vsub.f32 1.5, %v2266
        %v2268 = vmul.f32 %v2263, %v2267
        %vm2269 = vweird.f32 %v2121
        %vm2270 = vweird.f32 %v2263
        %vm2271 = vmor %vm2269, %vm2270
        %v2272 = vsel %vm2271, %v2263, %v2268
        %v2273 = vrsqrt.pop %v2122
        %v2274 = vmul.f32 %v2273, %v2122
        %v2275 = vmul.f32 %v2274, %v2273
        %v2276 = vmul.f32 0.5, %v2275
        %v2277 = vsub.f32 1.5, %v2276
        %v2278 = vmul.f32 %v2273, %v2277
        %vm2279 = vweird.f32 %v2122
        %vm2280 = vweird.f32 %v2273
        %vm2281 = vmor %vm2279, %vm2280
        %v2282 = vsel %vm2281, %v2273, %v2278
        %v2283 = vsub.f32 %v1913, %v2043
        %v2284 = vsub.f32 %v1914, %v2044
        %v2285 = vsub.f32 %v1915, %v2045
        %v2286 = vsub.f32 %v1916, %v2046
        %v2287 = vsub.f32 %v1917, %v2047
        %v2288 = vsub.f32 %v1918, %v2048
        %v2289 = vsub.f32 %v1919, %v2049
        %v2290 = vsub.f32 %v1920, %v2050
        %v2291 = vsub.f32 %v1921, %v2051
        %v2292 = vsub.f32 %v1922, %v2052
        %v2293 = vsub.f32 %v1923, %v2053
        %v2294 = vsub.f32 %v1924, %v2054
        %v2295 = vsub.f32 %v1925, %v2055
        %v2296 = vsub.f32 %v1926, %v2056
        %v2297 = vsub.f32 %v1927, %v2057
        %v2298 = vsub.f32 %v1928, %v2058
        %v2299 = vmul.f32 %v2283, %v2132
        %v2300 = vmul.f32 %v2284, %v2142
        %v2301 = vmul.f32 %v2285, %v2152
        %v2302 = vmul.f32 %v2286, %v2162
        %v2303 = vmul.f32 %v2287, %v2172
        %v2304 = vmul.f32 %v2288, %v2182
        %v2305 = vmul.f32 %v2289, %v2192
        %v2306 = vmul.f32 %v2290, %v2202
        %v2307 = vmul.f32 %v2291, %v2212
        %v2308 = vmul.f32 %v2292, %v2222
        %v2309 = vmul.f32 %v2293, %v2232
        %v2310 = vmul.f32 %v2294, %v2242
        %v2311 = vmul.f32 %v2295, %v2252
        %v2312 = vmul.f32 %v2296, %v2262
        %v2313 = vmul.f32 %v2297, %v2272
        %v2314 = vmul.f32 %v2298, %v2282
        %v2316 = vperm.slane %v1929, 0
        %v2318 = vmul.f32 %v2299, %v2316
        %v2319 = vmul.f32 %v2300, %v2316
        %v2320 = vmul.f32 %v2301, %v2316
        %v2321 = vmul.f32 %v2302, %v2316
        %v2322 = vmul.f32 %v2303, %v2316
        %v2323 = vmul.f32 %v2304, %v2316
        %v2324 = vmul.f32 %v2305, %v2316
        %v2325 = vmul.f32 %v2306, %v2316
        %v2326 = vmul.f32 %v2307, %v2316
        %v2327 = vmul.f32 %v2308, %v2316
        %v2328 = vmul.f32 %v2309, %v2316
        %v2329 = vmul.f32 %v2310, %v2316
        %v2330 = vmul.f32 %v2311, %v2316
        %v2331 = vmul.f32 %v2312, %v2316
        %v2332 = vmul.f32 %v2313, %v2316
        %v2333 = vmul.f32 %v2314, %v2316
        %v2335 = vperm.slane %v1930, 0
        %v2337 = vadd.f32 %v2318, %v2335
        %v2338 = vadd.f32 %v2319, %v2335
        %v2339 = vadd.f32 %v2320, %v2335
        %v2340 = vadd.f32 %v2321, %v2335
        %v2341 = vadd.f32 %v2322, %v2335
        %v2342 = vadd.f32 %v2323, %v2335
        %v2343 = vadd.f32 %v2324, %v2335
        %v2344 = vadd.f32 %v2325, %v2335
        %v2345 = vadd.f32 %v2326, %v2335
        %v2346 = vadd.f32 %v2327, %v2335
        %v2347 = vadd.f32 %v2328, %v2335
        %v2348 = vadd.f32 %v2329, %v2335
        %v2349 = vadd.f32 %v2330, %v2335
        %v2350 = vadd.f32 %v2331, %v2335
        %v2351 = vadd.f32 %v2332, %v2335
        %v2352 = vadd.f32 %v2333, %v2335
        %v2353 = vmax.f32 %v2337, 0.0
        %v2354 = vmax.f32 %v2338, 0.0
        %v2355 = vmax.f32 %v2339, 0.0
        %v2356 = vmax.f32 %v2340, 0.0
        %v2357 = vmax.f32 %v2341, 0.0
        %v2358 = vmax.f32 %v2342, 0.0
        %v2359 = vmax.f32 %v2343, 0.0
        %v2360 = vmax.f32 %v2344, 0.0
        %v2361 = vmax.f32 %v2345, 0.0
        %v2362 = vmax.f32 %v2346, 0.0
        %v2363 = vmax.f32 %v2347, 0.0
        %v2364 = vmax.f32 %v2348, 0.0
        %v2365 = vmax.f32 %v2349, 0.0
        %v2366 = vmax.f32 %v2350, 0.0
        %v2367 = vmax.f32 %v2351, 0.0
        %v2368 = vmax.f32 %v2352, 0.0
        %v2369 = vpack.c.bf16 %v2354, %v2353
        %v2370 = vpack.c.bf16 %v2356, %v2355
        %v2371 = vpack.c.bf16 %v2358, %v2357
        %v2372 = vpack.c.bf16 %v2360, %v2359
        %v2373 = vpack.c.bf16 %v2362, %v2361
        %v2374 = vpack.c.bf16 %v2364, %v2363
        %v2375 = vpack.c.bf16 %v2366, %v2365
        %v2376 = vpack.c.bf16 %v2368, %v2367
        %v2377 = vld [vmem:[%s11] sm:$0xf]
        %v2378 = vld [vmem:[%s11 + $0x4] sm:$0xf]
        %v2379 = vld [vmem:[%s11 + $0x8] sm:$0xf]
        %v2380 = vld [vmem:[%s11 + $0xc] sm:$0xf]
        %v2381 = vld [vmem:[%s12] sm:$0x1]
        %v2383 = vperm.slane %v2381, 0
        %v2389 = vunpack.c.l.b16 %v2377
        %v2390 = vunpack.c.l.b16 %v2378
        %v2391 = vunpack.c.l.b16 %v2379
        %v2392 = vunpack.c.l.b16 %v2380
        %v2393 = vpack.c.b16 %v2390, %v2389
        %v2394 = vpack.c.b16 %v2392, %v2391
        %v2398 = vsel %vm595, %v2369, 0
        %v2401 = vsel %vm595, %v2370, 0
        %v2404 = vsel %vm595, %v2371, 0
        %v2407 = vsel %vm595, %v2372, 0
        %v2410 = vsel %vm595, %v2373, 0
        %v2413 = vsel %vm595, %v2374, 0
        %v2416 = vsel %vm595, %v2375, 0
        %v2419 = vsel %vm595, %v2376, 0
        %2421 = vmatpush.bf16.msra.mxu0 0
        %2422 = vmatpush.bf16.msra.mxu0 0
        %2423 = vmatpush.bf16.msra.mxu0 0
        %2424 = vmatpush.bf16.msra.mxu0 0
        %2425 = vmatpush.bf16.msra.mxu0 0
        %2426 = vmatpush.bf16.msra.mxu0 0
        %2427 = vmatpush.bf16.msra.mxu0 %v2394
        %2428 = vmatpush.bf16.msra.mxu0 %v2393
        %2429 = vmatmul.bf16.gmra.mxu0 %v2398
        %v2430 = vpop.f32.mrf.mxu0
        %v2431 = vadd.f32 %v2383, %v2430
        %v2432 = vpop.f32.mrf.mxu0
        %v2433 = vadd.f32 %v2383, %v2432
        %2434 = vmatmul.bf16.gmra.mxu0 %v2401
        %v2435 = vpop.f32.mrf.mxu0
        %v2436 = vadd.f32 %v2383, %v2435
        %v2437 = vpop.f32.mrf.mxu0
        %v2438 = vadd.f32 %v2383, %v2437
        %2439 = vmatmul.bf16.gmra.mxu0 %v2404
        %v2440 = vpop.f32.mrf.mxu0
        %v2441 = vadd.f32 %v2383, %v2440
        %v2442 = vpop.f32.mrf.mxu0
        %v2443 = vadd.f32 %v2383, %v2442
        %2444 = vmatmul.bf16.gmra.mxu0 %v2407
        %v2445 = vpop.f32.mrf.mxu0
        %v2446 = vadd.f32 %v2383, %v2445
        %v2447 = vpop.f32.mrf.mxu0
        %v2448 = vadd.f32 %v2383, %v2447
        %2449 = vmatmul.bf16.gmra.mxu0 %v2410
        %v2450 = vpop.f32.mrf.mxu0
        %v2451 = vadd.f32 %v2383, %v2450
        %v2452 = vpop.f32.mrf.mxu0
        %v2453 = vadd.f32 %v2383, %v2452
        %2454 = vmatmul.bf16.gmra.mxu0 %v2413
        %v2455 = vpop.f32.mrf.mxu0
        %v2456 = vadd.f32 %v2383, %v2455
        %v2457 = vpop.f32.mrf.mxu0
        %v2458 = vadd.f32 %v2383, %v2457
        %2459 = vmatmul.bf16.gmra.mxu0 %v2416
        %v2460 = vpop.f32.mrf.mxu0
        %v2461 = vadd.f32 %v2383, %v2460
        %v2462 = vpop.f32.mrf.mxu0
        %v2463 = vadd.f32 %v2383, %v2462
        %2464 = vmatmul.bf16.gmra.mxu0 %v2419
        %v2465 = vpop.f32.mrf.mxu0
        %v2466 = vadd.f32 %v2383, %v2465
        %v2467 = vpop.f32.mrf.mxu0
        %v2468 = vadd.f32 %v2383, %v2467
        %2469 = vdwg.mxu0
        %2470 = vst [vmem:[%s434] sm:$0xff] %v2431
        %2471 = vst [vmem:[%s434 + $0x8] sm:$0xff] %v2433
        %2472 = vst [vmem:[%s434 + $0x10] sm:$0xff] %v2436
        %2473 = vst [vmem:[%s434 + $0x18] sm:$0xff] %v2438
        %2474 = vst [vmem:[%s434 + $0x20] sm:$0xff] %v2441
        %2475 = vst [vmem:[%s434 + $0x28] sm:$0xff] %v2443
        %2476 = vst [vmem:[%s434 + $0x30] sm:$0xff] %v2446
        %2477 = vst [vmem:[%s434 + $0x38] sm:$0xff] %v2448
        %2478 = vst [vmem:[%s434 + $0x40] sm:$0xff] %v2451
        %2479 = vst [vmem:[%s434 + $0x48] sm:$0xff] %v2453
        %2480 = vst [vmem:[%s434 + $0x50] sm:$0xff] %v2456
        %2481 = vst [vmem:[%s434 + $0x58] sm:$0xff] %v2458
        %2482 = vst [vmem:[%s434 + $0x60] sm:$0xff] %v2461
        %2483 = vst [vmem:[%s434 + $0x68] sm:$0xff] %v2463
        %2484 = vst [vmem:[%s434 + $0x70] sm:$0xff] %v2466
        %2485 = vst [vmem:[%s434 + $0x78] sm:$0xff] %v2468
        %s2486 = sand.u32 %s313, 1
        %s2487 = scalar_lea.sflag [#allocation3], %s2486
        %s2488 = sand.u32 %s313, 1
        %s2489 = smul.addr %s2488, 128
        %s2490 = scalar_lea.vmem [#allocation2], %s2489
        // Predicated region
        $region73: #{tpu_custom_call.1} parent=71 // pred_check
          %p2491 = pneg %p323
        $region74: #{tpu_custom_call.1} parent=71 // pred_check_branch
          %2493 = sbr.rel (%p2491) target = $region76
        $region75: #{tpu_custom_call.1} parent=71 // pred_region
          %s2494 = smul.u32 16, %s27
          %2496 = vsyncadd %s2487, 0
          %s2497 = smul.addr %s2494, 8
          %s2498 = scalar_lea.hbm %s13, %s2497
          %s2499 = sshll.u32 %s2490, 4
          %s2500 = int_to_ptr.vmem [resolvable:$true] %s2499
          %s2501 = sshll.u32 %s2498, 4
          %s2502 = int_to_ptr.hbm [resolvable:$true] %s2501
          %2507 = dma.vmem_to_hbm [thread:$0]  %s2500, 2048, %s2502, %s2487, 128, 128, 8
        $region76: #{tpu_custom_call.1} parent=71 // pred_fallthru
          _
      $region72: #{tpu_custom_call.1} parent=5 // pred_fallthru
        _
      %p2508 = scmp.le.s32.totalorder 2, %s22
      // Predicated region
      $region77: #{tpu_custom_call.1} parent=5 // pred_check
        %p2509 = pneg %p2508
      $region78: #{tpu_custom_call.1} parent=5 // pred_check_branch
        %2511 = sbr.rel (%p2509) target = $region80
      $region79: #{tpu_custom_call.1} parent=5 // pred_region
        %s2512 = ssub.s32 %s22, 2
        // Predicated region
        $region81: #{tpu_custom_call.1} parent=79 // pred_check
          %p2513 = pneg %p329
        $region82: #{tpu_custom_call.1} parent=79 // pred_check_branch
          %2515 = sbr.rel (%p2513) target = $region84
        $region83: #{tpu_custom_call.1} parent=79 // pred_region
          %s2516 = sand.u32 %s314, 1
          %s2517 = scalar_lea.sflag [#allocation3], %s2516
          %s2518 = sand.u32 %s314, 1
          %s2519 = smul.addr %s2518, 128
          %s2520 = scalar_lea.vmem [#allocation2], %s2519
          %2522 = dma.done %s2517, 2048
        $region84: #{tpu_custom_call.1} parent=79 // pred_fallthru
          _
      $region80: #{tpu_custom_call.1} parent=5 // pred_fallthru
        _
    $region6: #{tpu_custom_call.1} parent=1 // loop_footer
      %s26 = sadd.s32 1, %s22
    $region7: #{tpu_custom_call.1} parent=1 // loop_footer_branch
      %21 = sbr.rel target = $region3
    $region8: #{tpu_custom_call.1} parent=1 // loop_exit
      _
    %2523 = vsyncpa [#allocation3], 1
    %s2524 = scalar_lea.sflag [#allocation3], 1
    %2525 = vsyncpa %s2524, 1

</llo_original>
